<compile_context>
chip_gen: v6e
topology: v6e:2x2x1
jax: 0.10.0
libtpu: 0.0.40
codegen_flags: <defaults>
</compile_context>

<pallas_src>
import jax
import jax.numpy as jnp
from jax.experimental import pallas as pl
from jax.experimental.pallas import tpu as pltpu


def _round_up(x, m):
    return (x + m - 1) // m * m


def _gnn_kernel(skt_ref, ref_ref,
                wa3_ref, ba3_ref, wu3_ref, bu3_ref,
                wa4_ref, ba4_ref, wu4_ref, bu4_ref,
                out_ref):
    """One grid step = `block_b` batch elements, each handled in (c, hw) layout."""
    f32 = jnp.float32

    wa3 = wa3_ref[...].astype(f32); ba3 = ba3_ref[...].astype(f32)
    wu3 = wu3_ref[...].astype(f32); bu3 = bu3_ref[...].astype(f32)
    wa4 = wa4_ref[...].astype(f32); ba4 = ba4_ref[...].astype(f32)
    wu4 = wu4_ref[...].astype(f32); bu4 = bu4_ref[...].astype(f32)

    def build_graph_t(src_t, tgt_t):
        # src_t, tgt_t: (c, hw).  graph = softmax(src @ tgt^T, dim=-1) then
        # F.normalize(p=1, dim=-2), exactly like the PyTorch build_graph.
        # Contract the tiny channel axis (TN dimension numbers) to get a
        # lane-dense (hw, hw) result directly on the MXU.
        s = jax.lax.dot_general(src_t, tgt_t, (((0,), (0,)), ((), ())),
                                preferred_element_type=f32)          # (hw, hw)
        s = s - jnp.max(s, axis=-1, keepdims=True)
        e = jnp.exp(s)
        row_sum = jnp.sum(e, axis=-1, keepdims=True)                 # (hw, 1)
        p = e * pl.reciprocal(row_sum, approx=True)                  # row softmax
        col_sum = jnp.sum(p, axis=0, keepdims=True)                  # (1, hw)
        # p >= 0, so abs() is a no-op; clamp denominator at torch eps=1e-12.
        return p * pl.reciprocal(jnp.maximum(col_sum, 1e-12), approx=True)

    def gconv_t(A, src_t, msg_t, wa, ba, wu, bu):
        # Transposed Gconv: results stay (c, hw) lane-dense and every MXU
        # matmul has output width hw (full MXU width) instead of c.
        ax = jnp.maximum(jnp.dot(wa, src_t, preferred_element_type=f32) + ba, 0.0)
        ux = jnp.maximum(jnp.dot(wu, msg_t, preferred_element_type=f32) + bu, 0.0)
        # (A @ ux)^T == ux_t contracted with A over the "j" axis (NT form).
        au = jax.lax.dot_general(ux, A, (((1,), (1,)), ((), ())),
                                 preferred_element_type=f32)         # (c, hw)
        return au + ax

    bb = skt_ref.shape[0]
    for bi in range(bb):                        # static unroll over batch block
        skt_t = skt_ref[bi].astype(f32)         # (c, hw)
        ref_t = ref_ref[bi].astype(f32)         # (c, hw)

        sr = build_graph_t(skt_t, ref_t)                              # (hw, hw)
        gen_t = gconv_t(sr, skt_t, ref_t, wa3, ba3, wu3, bu3) + skt_t
        gg = build_graph_t(gen_t, gen_t)                              # (hw, hw)
        ggen_t = gconv_t(gg, gen_t, gen_t, wa4, ba4, wu4, bu4) + gen_t

        out_ref[bi] = ggen_t.astype(out_ref.dtype)                    # lane-dense store


def gnn_forward(skt_nchw, ref_nchw, params, *, block_b=None):
    """skt_nchw, ref_nchw: (b, c, h, w).  Returns (b, h*w, c) like PyTorch GNN.forward."""
    b, c, h, w = skt_nchw.shape
    hw = h * w
    cp = _round_up(c, 8)                # pad channels to a sublane-native size

    # NCHW -> (b, c, hw): just a reshape, no HBM transpose — the kernel works
    # in (c, hw) layout natively.
    skt = skt_nchw.reshape(b, c, hw)
    ref = ref_nchw.reshape(b, c, hw)
    if cp != c:
        pad = ((0, 0), (0, cp - c), (0, 0))
        skt = jnp.pad(skt, pad)
        ref = jnp.pad(ref, pad)

    def pad_linear(wt, bias):
        # PyTorch nn.Linear layout: wt (out, in), bias (out,).
        wt = jnp.pad(wt, ((0, cp - c), (0, cp - c)))
        bias = jnp.pad(bias, ((0, cp - c),)).reshape(cp, 1)
        return wt, bias

    wa3, ba3, wu3, bu3, wa4, ba4, wu4, bu4 = params
    wa3, ba3 = pad_linear(wa3, ba3); wu3, bu3 = pad_linear(wu3, bu3)
    wa4, ba4 = pad_linear(wa4, ba4); wu4, bu4 = pad_linear(wu4, bu4)

    if block_b is None:
        # Amortize the ~0.35us per-grid-step overhead over a few batch
        # elements while keeping >= 2 grid steps so the "parallel" batch axis
        # can still be split across TensorCores (megacore / v7x).
        block_b = 1
        for cand in (8, 4, 2):
            if b % cand == 0 and b // cand >= 2:
                block_b = cand
                break
    assert b % block_b == 0, f"block_b={block_b} must divide batch={b}"
    grid = (b // block_b,)

    io_spec = pl.BlockSpec((block_b, cp, hw), lambda i: (i, 0, 0))
    # Weight/bias blocks are grid-invariant; Pallas fetches them only once
    # (the second pipeline buffer they allocate is 8*cp*cp*4 bytes — negligible).
    w_spec = pl.BlockSpec((cp, cp), lambda i: (0, 0))
    b_spec = pl.BlockSpec((cp, 1), lambda i: (0, 0))

    # VMEM sizing: the (hw, hw) graph + softmax temporaries dominate.  Raise
    # the scoped-VMEM limit when they outgrow the default (16MiB v5e / 32MiB
    # v6e,v7x).
    est_vmem = 6 * hw * hw * 4 + 6 * block_b * cp * hw * 4 + 8 * cp * cp * 4
    compiler_kwargs = dict(dimension_semantics=("parallel",))
    if est_vmem > 24 * 1024 * 1024:
        compiler_kwargs["vmem_limit_bytes"] = min(int(est_vmem * 1.25),
                                                  112 * 1024 * 1024)
    # TODO(synk): for feature maps large enough that a single (hw, hw) graph
    # no longer fits VMEM (hw >~ 2500 on v7x's 64 MiB), tile build_graph and
    # the A@ux contraction flash-attention style over an "arbitrary" hw axis.

    out_cb = pl.pallas_call(
        _gnn_kernel,
        out_shape=jax.ShapeDtypeStruct((b, cp, hw), skt.dtype),
        grid_spec=pltpu.PrefetchScalarGridSpec(
            num_scalar_prefetch=0,
            grid=grid,
            in_specs=[io_spec, io_spec,
                      w_spec, b_spec, w_spec, b_spec,
                      w_spec, b_spec, w_spec, b_spec],
            out_specs=io_spec,
        ),
        compiler_params=pltpu.CompilerParams(**compiler_kwargs),
    )(skt, ref, wa3, ba3, wu3, bu3, wa4, ba4, wu4, bu4)

    # Back to the PyTorch output layout (b, hw, c): one transpose at the end.
    return jnp.transpose(out_cb[:, :c, :], (0, 2, 1))


def init_params(key, channel):
    """Deterministic init mimicking nn.Linear defaults (uniform +-1/sqrt(in)).
    Weights in PyTorch layout: W (out, in), bias (out,)."""
    bound = 1.0 / (channel ** 0.5)
    keys = jax.random.split(key, 8)

    def u(k, shape):
        return jax.random.uniform(k, shape, jnp.float32, -bound, bound)

    wa3 = u(keys[0], (channel, channel)); ba3 = u(keys[1], (channel,))
    wu3 = u(keys[2], (channel, channel)); bu3 = u(keys[3], (channel,))
    wa4 = u(keys[4], (channel, channel)); ba4 = u(keys[5], (channel,))
    wu4 = u(keys[6], (channel, channel)); bu4 = u(keys[7], (channel,))
    return (wa3, ba3, wu3, bu3, wa4, ba4, wu4, bu4)


def gnn_reference(skt_nchw, ref_nchw, params):
    """Pure-JAX reference mirroring the PyTorch forward (in (hw, c) layout)."""
    b, c, h, w = skt_nchw.shape
    hw = h * w
    hp = jax.lax.Precision.HIGHEST
    skt = jnp.transpose(skt_nchw.reshape(b, c, hw), (0, 2, 1))
    ref = jnp.transpose(ref_nchw.reshape(b, c, hw), (0, 2, 1))
    wa3, ba3, wu3, bu3, wa4, ba4, wu4, bu4 = params

    def build_graph(src, tgt):
        s = jnp.einsum("bic,bjc->bij", src, tgt, precision=hp)
        p = jax.nn.softmax(s, axis=-1)
        col = jnp.sum(jnp.abs(p), axis=-2, keepdims=True)
        return p / jnp.maximum(col, 1e-12)

    def gconv(A, source, message, wa, ba, wu, bu):
        ax = jax.nn.relu(jnp.einsum("bic,oc->bio", source, wa, precision=hp) + ba)
        ux = jax.nn.relu(jnp.einsum("bic,oc->bio", message, wu, precision=hp) + bu)
        return jnp.einsum("bij,bjo->bio", A, ux, precision=hp) + ax

    sr = build_graph(skt, ref)
    gen = gconv(sr, skt, ref, wa3, ba3, wu3, bu3) + skt
    gg = build_graph(gen, gen)
    ggen = gconv(gg, gen, gen, wa4, ba4, wu4, bu4) + gen
    return ggen


if __name__ == "__main__":
    key = jax.random.PRNGKey(0)
    k_skt, k_ref, k_par = jax.random.split(key, 3)

    b, c, h, w = 2, 4, 16, 16            # -> hw = 256
    skt = jax.random.normal(k_skt, (b, c, h, w), jnp.float32)
    ref = jax.random.normal(k_ref, (b, c, h, w), jnp.float32)
    params = init_params(k_par, c)

    out = jax.jit(gnn_forward)(skt, ref, params)
    out = jax.block_until_ready(out)
    assert out.shape == (b, h * w, c)

    ref_out = gnn_reference(skt, ref, params)
    max_err = float(jnp.max(jnp.abs(out - ref_out)))
    # approx-reciprocal (EUP) softmax/normalize introduces ~1e-3-level error.
    assert max_err < 3e-2, f"kernel/reference mismatch: max_err={max_err}"
    print("KERNEL_OK")
</pallas_src>

<mosaic_0001>
module attributes {stable_mosaic.version = 11 : i64} {
  func.func @_gnn_kernel(%arg0: i32, %arg1: memref<1x8x256xf32, #tpu.memory_space<vmem>>, %arg2: memref<1x8x256xf32, #tpu.memory_space<vmem>>, %arg3: memref<8x8xf32, #tpu.memory_space<vmem>>, %arg4: memref<8x1xf32, #tpu.memory_space<vmem>>, %arg5: memref<8x8xf32, #tpu.memory_space<vmem>>, %arg6: memref<8x1xf32, #tpu.memory_space<vmem>>, %arg7: memref<8x8xf32, #tpu.memory_space<vmem>>, %arg8: memref<8x1xf32, #tpu.memory_space<vmem>>, %arg9: memref<8x8xf32, #tpu.memory_space<vmem>>, %arg10: memref<8x1xf32, #tpu.memory_space<vmem>>, %arg11: memref<1x8x256xf32, #tpu.memory_space<vmem>>) attributes {dimension_semantics = [#tpu.dimension_semantics<parallel>], iteration_bounds = array<i64: 2>, scalar_prefetch = 0 : i64, scratch_operands = 0 : i64, tpu.core_type = #tpu.core_type<tc>, window_params = [{transform_indices = @transform_0, window_bounds = array<i64: 1, 8, 256>}, {transform_indices = @transform_1, window_bounds = array<i64: 1, 8, 256>}, {pipeline_mode = #tpu.pipeline_mode<synchronous>, transform_indices = @transform_2, window_bounds = array<i64: 8, 8>}, {pipeline_mode = #tpu.pipeline_mode<synchronous>, transform_indices = @transform_3, window_bounds = array<i64: 8, 1>}, {pipeline_mode = #tpu.pipeline_mode<synchronous>, transform_indices = @transform_4, window_bounds = array<i64: 8, 8>}, {pipeline_mode = #tpu.pipeline_mode<synchronous>, transform_indices = @transform_5, window_bounds = array<i64: 8, 1>}, {pipeline_mode = #tpu.pipeline_mode<synchronous>, transform_indices = @transform_6, window_bounds = array<i64: 8, 8>}, {pipeline_mode = #tpu.pipeline_mode<synchronous>, transform_indices = @transform_7, window_bounds = array<i64: 8, 1>}, {pipeline_mode = #tpu.pipeline_mode<synchronous>, transform_indices = @transform_8, window_bounds = array<i64: 8, 8>}, {pipeline_mode = #tpu.pipeline_mode<synchronous>, transform_indices = @transform_9, window_bounds = array<i64: 8, 1>}, {transform_indices = @transform_10, window_bounds = array<i64: 1, 8, 256>}]} {
    %c0 = arith.constant 0 : index
    %c0_0 = arith.constant 0 : index
    %0 = vector.load %arg3[%c0, %c0_0] : memref<8x8xf32, #tpu.memory_space<vmem>>, vector<8x8xf32>
    %c0_1 = arith.constant 0 : index
    %c0_2 = arith.constant 0 : index
    %1 = vector.load %arg4[%c0_1, %c0_2] : memref<8x1xf32, #tpu.memory_space<vmem>>, vector<8x1xf32>
    %c0_3 = arith.constant 0 : index
    %c0_4 = arith.constant 0 : index
    %2 = vector.load %arg5[%c0_3, %c0_4] : memref<8x8xf32, #tpu.memory_space<vmem>>, vector<8x8xf32>
    %c0_5 = arith.constant 0 : index
    %c0_6 = arith.constant 0 : index
    %3 = vector.load %arg6[%c0_5, %c0_6] : memref<8x1xf32, #tpu.memory_space<vmem>>, vector<8x1xf32>
    %c0_7 = arith.constant 0 : index
    %c0_8 = arith.constant 0 : index
    %4 = vector.load %arg7[%c0_7, %c0_8] : memref<8x8xf32, #tpu.memory_space<vmem>>, vector<8x8xf32>
    %c0_9 = arith.constant 0 : index
    %c0_10 = arith.constant 0 : index
    %5 = vector.load %arg8[%c0_9, %c0_10] : memref<8x1xf32, #tpu.memory_space<vmem>>, vector<8x1xf32>
    %c0_11 = arith.constant 0 : index
    %c0_12 = arith.constant 0 : index
    %6 = vector.load %arg9[%c0_11, %c0_12] : memref<8x8xf32, #tpu.memory_space<vmem>>, vector<8x8xf32>
    %c0_13 = arith.constant 0 : index
    %c0_14 = arith.constant 0 : index
    %7 = vector.load %arg10[%c0_13, %c0_14] : memref<8x1xf32, #tpu.memory_space<vmem>>, vector<8x1xf32>
    %c0_15 = arith.constant 0 : index
    %c0_16 = arith.constant 0 : index
    %c0_17 = arith.constant 0 : index
    %8 = vector.load %arg1[%c0_15, %c0_16, %c0_17] : memref<1x8x256xf32, #tpu.memory_space<vmem>>, vector<1x8x256xf32>
    %9 = vector.shape_cast %8 : vector<1x8x256xf32> to vector<8x256xf32>
    %c0_18 = arith.constant 0 : index
    %c0_19 = arith.constant 0 : index
    %c0_20 = arith.constant 0 : index
    %10 = vector.load %arg2[%c0_18, %c0_19, %c0_20] : memref<1x8x256xf32, #tpu.memory_space<vmem>>, vector<1x8x256xf32>
    %11 = vector.shape_cast %10 : vector<1x8x256xf32> to vector<8x256xf32>
    %cst = arith.constant dense<0.000000e+00> : vector<256x256xf32>
    %12 = tpu.matmul %9, %11, %cst {dimension_numbers = #tpu.dot_dimension_numbers<[0], [0], [1], [1], [0, 1, 1, 1], [], []>} : vector<8x256xf32>, vector<8x256xf32>, vector<256x256xf32> -> vector<256x256xf32>
    %cst_21 = arith.constant dense<0xFF800000> : vector<256xf32>
    %13 = vector.multi_reduction <maximumf>, %12, %cst_21 [1] : vector<256x256xf32> to vector<256xf32>
    %14 = vector.shape_cast %13 : vector<256xf32> to vector<256x1xf32>
    %15 = vector.broadcast %14 : vector<256x1xf32> to vector<256x256xf32>
    %16 = arith.subf %12, %15 : vector<256x256xf32>
    %17 = math.exp %16 : vector<256x256xf32>
    %cst_22 = arith.constant dense<0.000000e+00> : vector<256xf32>
    %18 = vector.multi_reduction <add>, %17, %cst_22 [1] : vector<256x256xf32> to vector<256xf32>
    %19 = vector.shape_cast %18 : vector<256xf32> to vector<256x1xf32>
    %20 = tpu.reciprocal %19 {approx = true} : vector<256x1xf32> -> vector<256x1xf32>
    %21 = vector.broadcast %20 : vector<256x1xf32> to vector<256x256xf32>
    %22 = arith.mulf %17, %21 : vector<256x256xf32>
    %cst_23 = arith.constant dense<0.000000e+00> : vector<256xf32>
    %23 = vector.multi_reduction <add>, %22, %cst_23 [0] : vector<256x256xf32> to vector<256xf32>
    %24 = vector.shape_cast %23 : vector<256xf32> to vector<1x256xf32>
    %cst_24 = arith.constant 9.99999996E-13 : f32
    %25 = vector.broadcast %cst_24 : f32 to vector<1x256xf32>
    %26 = arith.maximumf %24, %25 : vector<1x256xf32>
    %27 = tpu.reciprocal %26 {approx = true} : vector<1x256xf32> -> vector<1x256xf32>
    %28 = vector.broadcast %27 : vector<1x256xf32> to vector<256x256xf32>
    %29 = arith.mulf %22, %28 : vector<256x256xf32>
    %cst_25 = arith.constant dense<0.000000e+00> : vector<8x256xf32>
    %30 = tpu.matmul %0, %9, %cst_25 {dimension_numbers = #tpu.dot_dimension_numbers<[1], [0], [0], [1], [0, 0, 1, 1], [], []>} : vector<8x8xf32>, vector<8x256xf32>, vector<8x256xf32> -> vector<8x256xf32>
    %31 = vector.broadcast %1 : vector<8x1xf32> to vector<8x256xf32>
    %32 = arith.addf %30, %31 : vector<8x256xf32>
    %cst_26 = arith.constant 0.000000e+00 : f32
    %33 = vector.broadcast %cst_26 : f32 to vector<8x256xf32>
    %34 = arith.maximumf %32, %33 : vector<8x256xf32>
    %cst_27 = arith.constant dense<0.000000e+00> : vector<8x256xf32>
    %35 = tpu.matmul %2, %11, %cst_27 {dimension_numbers = #tpu.dot_dimension_numbers<[1], [0], [0], [1], [0, 0, 1, 1], [], []>} : vector<8x8xf32>, vector<8x256xf32>, vector<8x256xf32> -> vector<8x256xf32>
    %36 = vector.broadcast %3 : vector<8x1xf32> to vector<8x256xf32>
    %37 = arith.addf %35, %36 : vector<8x256xf32>
    %cst_28 = arith.constant 0.000000e+00 : f32
    %38 = vector.broadcast %cst_28 : f32 to vector<8x256xf32>
    %39 = arith.maximumf %37, %38 : vector<8x256xf32>
    %cst_29 = arith.constant dense<0.000000e+00> : vector<8x256xf32>
    %40 = tpu.matmul %39, %29, %cst_29 {dimension_numbers = #tpu.dot_dimension_numbers<[1], [1], [0], [0], [0, 0, 1, 0], [], []>} : vector<8x256xf32>, vector<256x256xf32>, vector<8x256xf32> -> vector<8x256xf32>
    %41 = arith.addf %40, %34 : vector<8x256xf32>
    %42 = arith.addf %41, %9 : vector<8x256xf32>
    %cst_30 = arith.constant dense<0.000000e+00> : vector<256x256xf32>
    %43 = tpu.matmul %42, %42, %cst_30 {dimension_numbers = #tpu.dot_dimension_numbers<[0], [0], [1], [1], [0, 1, 1, 1], [], []>} : vector<8x256xf32>, vector<8x256xf32>, vector<256x256xf32> -> vector<256x256xf32>
    %cst_31 = arith.constant dense<0xFF800000> : vector<256xf32>
    %44 = vector.multi_reduction <maximumf>, %43, %cst_31 [1] : vector<256x256xf32> to vector<256xf32>
    %45 = vector.shape_cast %44 : vector<256xf32> to vector<256x1xf32>
    %46 = vector.broadcast %45 : vector<256x1xf32> to vector<256x256xf32>
    %47 = arith.subf %43, %46 : vector<256x256xf32>
    %48 = math.exp %47 : vector<256x256xf32>
    %cst_32 = arith.constant dense<0.000000e+00> : vector<256xf32>
    %49 = vector.multi_reduction <add>, %48, %cst_32 [1] : vector<256x256xf32> to vector<256xf32>
    %50 = vector.shape_cast %49 : vector<256xf32> to vector<256x1xf32>
    %51 = tpu.reciprocal %50 {approx = true} : vector<256x1xf32> -> vector<256x1xf32>
    %52 = vector.broadcast %51 : vector<256x1xf32> to vector<256x256xf32>
    %53 = arith.mulf %48, %52 : vector<256x256xf32>
    %cst_33 = arith.constant dense<0.000000e+00> : vector<256xf32>
    %54 = vector.multi_reduction <add>, %53, %cst_33 [0] : vector<256x256xf32> to vector<256xf32>
    %55 = vector.shape_cast %54 : vector<256xf32> to vector<1x256xf32>
    %cst_34 = arith.constant 9.99999996E-13 : f32
    %56 = vector.broadcast %cst_34 : f32 to vector<1x256xf32>
    %57 = arith.maximumf %55, %56 : vector<1x256xf32>
    %58 = tpu.reciprocal %57 {approx = true} : vector<1x256xf32> -> vector<1x256xf32>
    %59 = vector.broadcast %58 : vector<1x256xf32> to vector<256x256xf32>
    %60 = arith.mulf %53, %59 : vector<256x256xf32>
    %cst_35 = arith.constant dense<0.000000e+00> : vector<8x256xf32>
    %61 = tpu.matmul %4, %42, %cst_35 {dimension_numbers = #tpu.dot_dimension_numbers<[1], [0], [0], [1], [0, 0, 1, 1], [], []>} : vector<8x8xf32>, vector<8x256xf32>, vector<8x256xf32> -> vector<8x256xf32>
    %62 = vector.broadcast %5 : vector<8x1xf32> to vector<8x256xf32>
    %63 = arith.addf %61, %62 : vector<8x256xf32>
    %cst_36 = arith.constant 0.000000e+00 : f32
    %64 = vector.broadcast %cst_36 : f32 to vector<8x256xf32>
    %65 = arith.maximumf %63, %64 : vector<8x256xf32>
    %cst_37 = arith.constant dense<0.000000e+00> : vector<8x256xf32>
    %66 = tpu.matmul %6, %42, %cst_37 {dimension_numbers = #tpu.dot_dimension_numbers<[1], [0], [0], [1], [0, 0, 1, 1], [], []>} : vector<8x8xf32>, vector<8x256xf32>, vector<8x256xf32> -> vector<8x256xf32>
    %67 = vector.broadcast %7 : vector<8x1xf32> to vector<8x256xf32>
    %68 = arith.addf %66, %67 : vector<8x256xf32>
    %cst_38 = arith.constant 0.000000e+00 : f32
    %69 = vector.broadcast %cst_38 : f32 to vector<8x256xf32>
    %70 = arith.maximumf %68, %69 : vector<8x256xf32>
    %cst_39 = arith.constant dense<0.000000e+00> : vector<8x256xf32>
    %71 = tpu.matmul %70, %60, %cst_39 {dimension_numbers = #tpu.dot_dimension_numbers<[1], [1], [0], [0], [0, 0, 1, 0], [], []>} : vector<8x256xf32>, vector<256x256xf32>, vector<8x256xf32> -> vector<8x256xf32>
    %72 = arith.addf %71, %65 : vector<8x256xf32>
    %73 = arith.addf %72, %42 : vector<8x256xf32>
    %c0_40 = arith.constant 0 : index
    %c0_41 = arith.constant 0 : index
    %c0_42 = arith.constant 0 : index
    %74 = vector.load %arg11[%c0_40, %c0_41, %c0_42] : memref<1x8x256xf32, #tpu.memory_space<vmem>>, vector<1x8x256xf32>
    %75 = vector.shape_cast %74 : vector<1x8x256xf32> to vector<8x256xf32>
    %76 = vector.shape_cast %73 : vector<8x256xf32> to vector<1x8x256xf32>
    tpu.vector_store %arg11[%c0_40, %c0_41, %c0_42], %76 {strides = array<i32>} : memref<1x8x256xf32, #tpu.memory_space<vmem>>, vector<1x8x256xf32>,
    return
  }
  func.func @transform_0(%arg0: i32) -> (i32, i32, i32) {
    %c0_i32 = arith.constant 0 : i32
    %c0_i32_0 = arith.constant 0 : i32
    %c0_i32_1 = arith.constant 0 : i32
    return %arg0, %c0_i32, %c0_i32_0 : i32, i32, i32
  }
  func.func @transform_1(%arg0: i32) -> (i32, i32, i32) {
    %c0_i32 = arith.constant 0 : i32
    %c0_i32_0 = arith.constant 0 : i32
    %c0_i32_1 = arith.constant 0 : i32
    return %arg0, %c0_i32, %c0_i32_0 : i32, i32, i32
  }
  func.func @transform_2(%arg0: i32) -> (i32, i32) {
    %c0_i32 = arith.constant 0 : i32
    %c0_i32_0 = arith.constant 0 : i32
    %c0_i32_1 = arith.constant 0 : i32
    return %c0_i32, %c0_i32_0 : i32, i32
  }
  func.func @transform_3(%arg0: i32) -> (i32, i32) {
    %c0_i32 = arith.constant 0 : i32
    %c0_i32_0 = arith.constant 0 : i32
    %c0_i32_1 = arith.constant 0 : i32
    return %c0_i32, %c0_i32_0 : i32, i32
  }
  func.func @transform_4(%arg0: i32) -> (i32, i32) {
    %c0_i32 = arith.constant 0 : i32
    %c0_i32_0 = arith.constant 0 : i32
    %c0_i32_1 = arith.constant 0 : i32
    return %c0_i32, %c0_i32_0 : i32, i32
  }
  func.func @transform_5(%arg0: i32) -> (i32, i32) {
    %c0_i32 = arith.constant 0 : i32
    %c0_i32_0 = arith.constant 0 : i32
    %c0_i32_1 = arith.constant 0 : i32
    return %c0_i32, %c0_i32_0 : i32, i32
  }
  func.func @transform_6(%arg0: i32) -> (i32, i32) {
    %c0_i32 = arith.constant 0 : i32
    %c0_i32_0 = arith.constant 0 : i32
    %c0_i32_1 = arith.constant 0 : i32
    return %c0_i32, %c0_i32_0 : i32, i32
  }
  func.func @transform_7(%arg0: i32) -> (i32, i32) {
    %c0_i32 = arith.constant 0 : i32
    %c0_i32_0 = arith.constant 0 : i32
    %c0_i32_1 = arith.constant 0 : i32
    return %c0_i32, %c0_i32_0 : i32, i32
  }
  func.func @transform_8(%arg0: i32) -> (i32, i32) {
    %c0_i32 = arith.constant 0 : i32
    %c0_i32_0 = arith.constant 0 : i32
    %c0_i32_1 = arith.constant 0 : i32
    return %c0_i32, %c0_i32_0 : i32, i32
  }
  func.func @transform_9(%arg0: i32) -> (i32, i32) {
    %c0_i32 = arith.constant 0 : i32
    %c0_i32_0 = arith.constant 0 : i32
    %c0_i32_1 = arith.constant 0 : i32
    return %c0_i32, %c0_i32_0 : i32, i32
  }
  func.func @transform_10(%arg0: i32) -> (i32, i32, i32) {
    %c0_i32 = arith.constant 0 : i32
    %c0_i32_0 = arith.constant 0 : i32
    %c0_i32_1 = arith.constant 0 : i32
    return %arg0, %c0_i32, %c0_i32_0 : i32, i32, i32
  }
}

</mosaic_0001>

<llo_original>
// kernel: gnn_forward.1
$region0: #{gnn_forward.1}
  #allocation0 [shape = 'u32[]', space=smem, size = 0x4, offset = 0x4, fixed_abs, tag = 'smem constant byte address 0x4 - core index']
  #allocation1 [shape = 'u32[144,128]{1,0:T(1,128)}', space=vmem, size = 0x12000, scoped, tag = 'internal scratch']
  %s0 = inlined_call_operand.vmem [shape: f32[2,8,256], index: 0, kind: input, shape index: {}]
  %s1 = inlined_call_operand.vmem [shape: f32[2,8,256], index: 1, kind: input, shape index: {}]
  %s2 = inlined_call_operand.vmem [shape: f32[8,8], index: 2, kind: input, shape index: {}]
  %s3 = inlined_call_operand.vmem [shape: f32[8,1], index: 3, kind: input, shape index: {}]
  %s4 = inlined_call_operand.vmem [shape: f32[8,8], index: 4, kind: input, shape index: {}]
  %s5 = inlined_call_operand.vmem [shape: f32[8,1], index: 5, kind: input, shape index: {}]
  %s6 = inlined_call_operand.vmem [shape: f32[8,8], index: 6, kind: input, shape index: {}]
  %s7 = inlined_call_operand.vmem [shape: f32[8,1], index: 7, kind: input, shape index: {}]
  %s8 = inlined_call_operand.vmem [shape: f32[8,8], index: 8, kind: input, shape index: {}]
  %s9 = inlined_call_operand.vmem [shape: f32[8,1], index: 9, kind: input, shape index: {}]
  %s10 = inlined_call_operand.vmem [shape: f32[2,8,256], index: 10, kind: output, shape index: {}]
  %s11 = sld [smem:[#allocation0]]
  $region73: #{gnn_forward.1} parent=0
    _
  %s13 = ssub.s32 1, %s11
  %s14 = scalar_select 0, %s13, %s11
  loop: start=0, step=1, limit=4
  $region2: #{gnn_forward.1} parent=0 // loop_pre_header
    _
  $region3: #{gnn_forward.1} parent=0 // loop_header
    %s16 = sphi 0, %s20
    %p17 = scmp.ge.s32.totalorder %s16, 4
    %s26 = sphi 0, %s28
    %s29 = sphi 0, %s26
    %s30 = sphi 0, %s29
    %s46 = sphi 0, %s30
    %s52 = sphi 0, %s54
    %s55 = sphi 0, %s52
    %s56 = sphi 0, %s55
    %s72 = sphi 0, %s56
    %s76 = sphi 0, %s76
    %s78 = sphi 0, %s76
    %s79 = sphi 0, %s78
    %s93 = sphi 0, %s79
    %s97 = sphi 0, %s97
    %s99 = sphi 0, %s97
    %s100 = sphi 0, %s99
    %s114 = sphi 0, %s100
    %s118 = sphi 0, %s118
    %s120 = sphi 0, %s118
    %s121 = sphi 0, %s120
    %s135 = sphi 0, %s121
    %s139 = sphi 0, %s139
    %s141 = sphi 0, %s139
    %s142 = sphi 0, %s141
    %s156 = sphi 0, %s142
    %s160 = sphi 0, %s160
    %s162 = sphi 0, %s160
    %s163 = sphi 0, %s162
    %s177 = sphi 0, %s163
    %s181 = sphi 0, %s181
    %s183 = sphi 0, %s181
    %s184 = sphi 0, %s183
    %s198 = sphi 0, %s184
    %s202 = sphi 0, %s202
    %s204 = sphi 0, %s202
    %s205 = sphi 0, %s204
    %s219 = sphi 0, %s205
    %s223 = sphi 0, %s223
    %s225 = sphi 0, %s223
    %s226 = sphi 0, %s225
    %s240 = sphi 0, %s226
    %s246 = sphi 0, %s248
    %s249 = sphi 0, %s246
    %s250 = sphi 0, %s249
    %s266 = sphi 0, %s250
  $region4: #{gnn_forward.1} parent=0 // loop_header_branch
    %19 = sbr.rel (%p17) target = $region8
  $region5: #{gnn_forward.1} parent=0 // loop_body
    %s21 = ssub.s32 %s16, 1
    %s22 = ssub.s32 %s16, 2
    %s23 = sadd.s32 %s16, 1
    %s24 = ssub.s32 %s16, %s23
    %p25 = scmp.eq.s32.totalorder %s24, 0
    %s27 = sadd.s32 %s26, 1
    %s28 = scalar_select %p25, %s26, %s27
    %p31 = pneg %p25
    %p32 = scmp.eq.s32.totalorder %s16, 1
    %p33 = por %p31, %p32
    %p34 = scmp.ne.s32.totalorder %s26, %s29
    %p35 = scmp.eq.s32.totalorder %s16, 0
    %p36 = por %p34, %p35
    %p37 = scmp.ne.s32.totalorder %s26, %s29
    %p38 = scmp.eq.s32.totalorder %s21, 1
    %p39 = por %p37, %p38
    %p40 = scmp.ne.s32.totalorder %s29, %s30
    %p41 = scmp.eq.s32.totalorder %s21, 0
    %p42 = por %p40, %p41
    %p43 = scmp.ne.s32.totalorder %s29, %s30
    %p44 = scmp.eq.s32.totalorder %s22, 1
    %p45 = por %p43, %p44
    %p47 = scmp.ne.s32.totalorder %s30, %s46
    %p48 = scmp.eq.s32.totalorder %s22, 0
    %p49 = por %p47, %p48
    %s50 = ssub.s32 %s16, %s23
    %p51 = scmp.eq.s32.totalorder %s50, 0
    %s53 = sadd.s32 %s52, 1
    %s54 = scalar_select %p51, %s52, %s53
    %p57 = pneg %p51
    %p58 = scmp.eq.s32.totalorder %s16, 1
    %p59 = por %p57, %p58
    %p60 = scmp.ne.s32.totalorder %s52, %s55
    %p61 = scmp.eq.s32.totalorder %s16, 0
    %p62 = por %p60, %p61
    %p63 = scmp.ne.s32.totalorder %s52, %s55
    %p64 = scmp.eq.s32.totalorder %s21, 1
    %p65 = por %p63, %p64
    %p66 = scmp.ne.s32.totalorder %s55, %s56
    %p67 = scmp.eq.s32.totalorder %s21, 0
    %p68 = por %p66, %p67
    %p69 = scmp.ne.s32.totalorder %s55, %s56
    %p70 = scmp.eq.s32.totalorder %s22, 1
    %p71 = por %p69, %p70
    %p73 = scmp.ne.s32.totalorder %s56, %s72
    %p74 = scmp.eq.s32.totalorder %s22, 0
    %p75 = por %p73, %p74
    %s77 = sadd.s32 %s76, 1
    %p80 = scmp.eq.s32.totalorder %s16, 1
    %p81 = scmp.ne.s32.totalorder %s76, %s78
    %p82 = scmp.eq.s32.totalorder %s16, 0
    %p83 = por %p81, %p82
    %p84 = scmp.ne.s32.totalorder %s76, %s78
    %p85 = scmp.eq.s32.totalorder %s21, 1
    %p86 = por %p84, %p85
    %p87 = scmp.ne.s32.totalorder %s78, %s79
    %p88 = scmp.eq.s32.totalorder %s21, 0
    %p89 = por %p87, %p88
    %p90 = scmp.ne.s32.totalorder %s78, %s79
    %p91 = scmp.eq.s32.totalorder %s22, 1
    %p92 = por %p90, %p91
    %p94 = scmp.ne.s32.totalorder %s79, %s93
    %p95 = scmp.eq.s32.totalorder %s22, 0
    %p96 = por %p94, %p95
    %s98 = sadd.s32 %s97, 1
    %p101 = scmp.eq.s32.totalorder %s16, 1
    %p102 = scmp.ne.s32.totalorder %s97, %s99
    %p103 = scmp.eq.s32.totalorder %s16, 0
    %p104 = por %p102, %p103
    %p105 = scmp.ne.s32.totalorder %s97, %s99
    %p106 = scmp.eq.s32.totalorder %s21, 1
    %p107 = por %p105, %p106
    %p108 = scmp.ne.s32.totalorder %s99, %s100
    %p109 = scmp.eq.s32.totalorder %s21, 0
    %p110 = por %p108, %p109
    %p111 = scmp.ne.s32.totalorder %s99, %s100
    %p112 = scmp.eq.s32.totalorder %s22, 1
    %p113 = por %p111, %p112
    %p115 = scmp.ne.s32.totalorder %s100, %s114
    %p116 = scmp.eq.s32.totalorder %s22, 0
    %p117 = por %p115, %p116
    %s119 = sadd.s32 %s118, 1
    %p122 = scmp.eq.s32.totalorder %s16, 1
    %p123 = scmp.ne.s32.totalorder %s118, %s120
    %p124 = scmp.eq.s32.totalorder %s16, 0
    %p125 = por %p123, %p124
    %p126 = scmp.ne.s32.totalorder %s118, %s120
    %p127 = scmp.eq.s32.totalorder %s21, 1
    %p128 = por %p126, %p127
    %p129 = scmp.ne.s32.totalorder %s120, %s121
    %p130 = scmp.eq.s32.totalorder %s21, 0
    %p131 = por %p129, %p130
    %p132 = scmp.ne.s32.totalorder %s120, %s121
    %p133 = scmp.eq.s32.totalorder %s22, 1
    %p134 = por %p132, %p133
    %p136 = scmp.ne.s32.totalorder %s121, %s135
    %p137 = scmp.eq.s32.totalorder %s22, 0
    %p138 = por %p136, %p137
    %s140 = sadd.s32 %s139, 1
    %p143 = scmp.eq.s32.totalorder %s16, 1
    %p144 = scmp.ne.s32.totalorder %s139, %s141
    %p145 = scmp.eq.s32.totalorder %s16, 0
    %p146 = por %p144, %p145
    %p147 = scmp.ne.s32.totalorder %s139, %s141
    %p148 = scmp.eq.s32.totalorder %s21, 1
    %p149 = por %p147, %p148
    %p150 = scmp.ne.s32.totalorder %s141, %s142
    %p151 = scmp.eq.s32.totalorder %s21, 0
    %p152 = por %p150, %p151
    %p153 = scmp.ne.s32.totalorder %s141, %s142
    %p154 = scmp.eq.s32.totalorder %s22, 1
    %p155 = por %p153, %p154
    %p157 = scmp.ne.s32.totalorder %s142, %s156
    %p158 = scmp.eq.s32.totalorder %s22, 0
    %p159 = por %p157, %p158
    %s161 = sadd.s32 %s160, 1
    %p164 = scmp.eq.s32.totalorder %s16, 1
    %p165 = scmp.ne.s32.totalorder %s160, %s162
    %p166 = scmp.eq.s32.totalorder %s16, 0
    %p167 = por %p165, %p166
    %p168 = scmp.ne.s32.totalorder %s160, %s162
    %p169 = scmp.eq.s32.totalorder %s21, 1
    %p170 = por %p168, %p169
    %p171 = scmp.ne.s32.totalorder %s162, %s163
    %p172 = scmp.eq.s32.totalorder %s21, 0
    %p173 = por %p171, %p172
    %p174 = scmp.ne.s32.totalorder %s162, %s163
    %p175 = scmp.eq.s32.totalorder %s22, 1
    %p176 = por %p174, %p175
    %p178 = scmp.ne.s32.totalorder %s163, %s177
    %p179 = scmp.eq.s32.totalorder %s22, 0
    %p180 = por %p178, %p179
    %s182 = sadd.s32 %s181, 1
    %p185 = scmp.eq.s32.totalorder %s16, 1
    %p186 = scmp.ne.s32.totalorder %s181, %s183
    %p187 = scmp.eq.s32.totalorder %s16, 0
    %p188 = por %p186, %p187
    %p189 = scmp.ne.s32.totalorder %s181, %s183
    %p190 = scmp.eq.s32.totalorder %s21, 1
    %p191 = por %p189, %p190
    %p192 = scmp.ne.s32.totalorder %s183, %s184
    %p193 = scmp.eq.s32.totalorder %s21, 0
    %p194 = por %p192, %p193
    %p195 = scmp.ne.s32.totalorder %s183, %s184
    %p196 = scmp.eq.s32.totalorder %s22, 1
    %p197 = por %p195, %p196
    %p199 = scmp.ne.s32.totalorder %s184, %s198
    %p200 = scmp.eq.s32.totalorder %s22, 0
    %p201 = por %p199, %p200
    %s203 = sadd.s32 %s202, 1
    %p206 = scmp.eq.s32.totalorder %s16, 1
    %p207 = scmp.ne.s32.totalorder %s202, %s204
    %p208 = scmp.eq.s32.totalorder %s16, 0
    %p209 = por %p207, %p208
    %p210 = scmp.ne.s32.totalorder %s202, %s204
    %p211 = scmp.eq.s32.totalorder %s21, 1
    %p212 = por %p210, %p211
    %p213 = scmp.ne.s32.totalorder %s204, %s205
    %p214 = scmp.eq.s32.totalorder %s21, 0
    %p215 = por %p213, %p214
    %p216 = scmp.ne.s32.totalorder %s204, %s205
    %p217 = scmp.eq.s32.totalorder %s22, 1
    %p218 = por %p216, %p217
    %p220 = scmp.ne.s32.totalorder %s205, %s219
    %p221 = scmp.eq.s32.totalorder %s22, 0
    %p222 = por %p220, %p221
    %s224 = sadd.s32 %s223, 1
    %p227 = scmp.eq.s32.totalorder %s16, 1
    %p228 = scmp.ne.s32.totalorder %s223, %s225
    %p229 = scmp.eq.s32.totalorder %s16, 0
    %p230 = por %p228, %p229
    %p231 = scmp.ne.s32.totalorder %s223, %s225
    %p232 = scmp.eq.s32.totalorder %s21, 1
    %p233 = por %p231, %p232
    %p234 = scmp.ne.s32.totalorder %s225, %s226
    %p235 = scmp.eq.s32.totalorder %s21, 0
    %p236 = por %p234, %p235
    %p237 = scmp.ne.s32.totalorder %s225, %s226
    %p238 = scmp.eq.s32.totalorder %s22, 1
    %p239 = por %p237, %p238
    %p241 = scmp.ne.s32.totalorder %s226, %s240
    %p242 = scmp.eq.s32.totalorder %s22, 0
    %p243 = por %p241, %p242
    %s244 = ssub.s32 %s16, %s23
    %p245 = scmp.eq.s32.totalorder %s244, 0
    %s247 = sadd.s32 %s246, 1
    %s248 = scalar_select %p245, %s246, %s247
    %p251 = pneg %p245
    %p252 = scmp.eq.s32.totalorder %s16, 1
    %p253 = por %p251, %p252
    %p254 = scmp.ne.s32.totalorder %s246, %s249
    %p255 = scmp.eq.s32.totalorder %s16, 0
    %p256 = por %p254, %p255
    %p257 = scmp.ne.s32.totalorder %s246, %s249
    %p258 = scmp.eq.s32.totalorder %s21, 1
    %p259 = por %p257, %p258
    %p260 = scmp.ne.s32.totalorder %s249, %s250
    %p261 = scmp.eq.s32.totalorder %s21, 0
    %p262 = por %p260, %p261
    %p263 = scmp.ne.s32.totalorder %s249, %s250
    %p264 = scmp.eq.s32.totalorder %s22, 1
    %p265 = por %p263, %p264
    %p267 = scmp.ne.s32.totalorder %s250, %s266
    %p268 = scmp.eq.s32.totalorder %s22, 0
    %p269 = por %p267, %p268
    %p270 = scmp.le.s32.totalorder 1, %s16
    %p271 = scmp.lt.s32.totalorder %s16, 3
    %p272 = pnand %p270, %p271
    %p273 = pneg %p272
    // Predicated region
    $region9: #{gnn_forward.1} parent=5 // pred_check
      _
    $region10: #{gnn_forward.1} parent=5 // pred_check_branch
      %275 = sbr.rel (%p272) target = $region12
    $region11: #{gnn_forward.1} parent=5 // pred_region
      %s276 = ssub.s32 %s16, 1
      // Predicated region
      $region13: #{gnn_forward.1} parent=11 // pred_check
        %p277 = pneg %p89
      $region14: #{gnn_forward.1} parent=11 // pred_check_branch
        %279 = sbr.rel (%p277) target = $region16
      $region15: #{gnn_forward.1} parent=11 // pred_region
        _
      $region16: #{gnn_forward.1} parent=11 // pred_fallthru
        _
      // Predicated region
      $region17: #{gnn_forward.1} parent=11 // pred_check
        %p280 = pneg %p110
      $region18: #{gnn_forward.1} parent=11 // pred_check_branch
        %282 = sbr.rel (%p280) target = $region20
      $region19: #{gnn_forward.1} parent=11 // pred_region
        _
      $region20: #{gnn_forward.1} parent=11 // pred_fallthru
        _
      // Predicated region
      $region21: #{gnn_forward.1} parent=11 // pred_check
        %p283 = pneg %p131
      $region22: #{gnn_forward.1} parent=11 // pred_check_branch
        %285 = sbr.rel (%p283) target = $region24
      $region23: #{gnn_forward.1} parent=11 // pred_region
        _
      $region24: #{gnn_forward.1} parent=11 // pred_fallthru
        _
      // Predicated region
      $region25: #{gnn_forward.1} parent=11 // pred_check
        %p286 = pneg %p152
      $region26: #{gnn_forward.1} parent=11 // pred_check_branch
        %288 = sbr.rel (%p286) target = $region28
      $region27: #{gnn_forward.1} parent=11 // pred_region
        _
      $region28: #{gnn_forward.1} parent=11 // pred_fallthru
        _
      // Predicated region
      $region29: #{gnn_forward.1} parent=11 // pred_check
        %p289 = pneg %p173
      $region30: #{gnn_forward.1} parent=11 // pred_check_branch
        %291 = sbr.rel (%p289) target = $region32
      $region31: #{gnn_forward.1} parent=11 // pred_region
        _
      $region32: #{gnn_forward.1} parent=11 // pred_fallthru
        _
      // Predicated region
      $region33: #{gnn_forward.1} parent=11 // pred_check
        %p292 = pneg %p194
      $region34: #{gnn_forward.1} parent=11 // pred_check_branch
        %294 = sbr.rel (%p292) target = $region36
      $region35: #{gnn_forward.1} parent=11 // pred_region
        _
      $region36: #{gnn_forward.1} parent=11 // pred_fallthru
        _
      // Predicated region
      $region37: #{gnn_forward.1} parent=11 // pred_check
        %p295 = pneg %p215
      $region38: #{gnn_forward.1} parent=11 // pred_check_branch
        %297 = sbr.rel (%p295) target = $region40
      $region39: #{gnn_forward.1} parent=11 // pred_region
        _
      $region40: #{gnn_forward.1} parent=11 // pred_fallthru
        _
      // Predicated region
      $region41: #{gnn_forward.1} parent=11 // pred_check
        %p298 = pneg %p236
      $region42: #{gnn_forward.1} parent=11 // pred_check_branch
        %300 = sbr.rel (%p298) target = $region44
      $region43: #{gnn_forward.1} parent=11 // pred_region
        _
      $region44: #{gnn_forward.1} parent=11 // pred_fallthru
        _
    $region12: #{gnn_forward.1} parent=5 // pred_fallthru
      _
    %p301 = scmp.lt.s32.totalorder %s16, 2
    // Predicated region
    $region45: #{gnn_forward.1} parent=5 // pred_check
      %p302 = pneg %p301
    $region46: #{gnn_forward.1} parent=5 // pred_check_branch
      %304 = sbr.rel (%p302) target = $region48
    $region47: #{gnn_forward.1} parent=5 // pred_region
      // Predicated region
      $region49: #{gnn_forward.1} parent=47 // pred_check
        %p305 = pneg %p36
      $region50: #{gnn_forward.1} parent=47 // pred_check_branch
        %307 = sbr.rel (%p305) target = $region52
      $region51: #{gnn_forward.1} parent=47 // pred_region
        %p308 = scmp.lt.s32.totalorder %s16, 1
        %s309 = scalar_select %p308, %s16, 1
        %s310 = smul.addr %s309, 2
        %s311 = smul.addr %s310, 8
        %s312 = scalar_lea.vmem %s0, %s311
      $region52: #{gnn_forward.1} parent=47 // pred_fallthru
        _
      // Predicated region
      $region53: #{gnn_forward.1} parent=47 // pred_check
        %p313 = pneg %p62
      $region54: #{gnn_forward.1} parent=47 // pred_check_branch
        %315 = sbr.rel (%p313) target = $region56
      $region55: #{gnn_forward.1} parent=47 // pred_region
        %p316 = scmp.lt.s32.totalorder %s16, 1
        %s317 = scalar_select %p316, %s16, 1
        %s318 = smul.addr %s317, 2
        %s319 = smul.addr %s318, 8
        %s320 = scalar_lea.vmem %s1, %s319
      $region56: #{gnn_forward.1} parent=47 // pred_fallthru
        _
    $region48: #{gnn_forward.1} parent=5 // pred_fallthru
      _
    %p321 = scmp.le.s32.totalorder 1, %s16
    %p322 = scmp.lt.s32.totalorder %s16, 3
    %p323 = pnand %p321, %p322
    %p324 = pneg %p323
    // Predicated region
    $region57: #{gnn_forward.1} parent=5 // pred_check
      _
    $region58: #{gnn_forward.1} parent=5 // pred_check_branch
      %326 = sbr.rel (%p323) target = $region60
    $region59: #{gnn_forward.1} parent=5 // pred_region
      %s327 = ssub.s32 %s16, 1
      %p328 = scmp.lt.s32.totalorder %s21, 1
      %s329 = scalar_select %p328, %s21, 1
      %s330 = smul.addr %s329, 2
      %s331 = smul.addr %s330, 8
      %s332 = scalar_lea.vmem %s0, %s331
      %p333 = pneg %p42
      %p334 = pneg %p39
      %p335 = scmp.lt.s32.totalorder %s21, 1
      %s336 = scalar_select %p335, %s21, 1
      %s337 = smul.addr %s336, 2
      %s338 = smul.addr %s337, 8
      %s339 = scalar_lea.vmem %s1, %s338
      %p340 = pneg %p68
      %p341 = pneg %p65
      %p342 = pneg %p89
      %p343 = pneg %p86
      %p344 = pneg %p110
      %p345 = pneg %p107
      %p346 = pneg %p131
      %p347 = pneg %p128
      %p348 = pneg %p152
      %p349 = pneg %p149
      %p350 = pneg %p173
      %p351 = pneg %p170
      %p352 = pneg %p194
      %p353 = pneg %p191
      %p354 = pneg %p215
      %p355 = pneg %p212
      %p356 = pneg %p236
      %p357 = pneg %p233
      %p358 = pneg %p262
      %p359 = pneg %p259
      %p360 = scmp.lt.s32.totalorder %s21, 1
      %s361 = scalar_select %p360, %s21, 1
      %s362 = smul.addr %s361, 2
      %s363 = smul.addr %s362, 8
      %s364 = scalar_lea.vmem %s10, %s363
      %p365 = scmp.lt.s32.totalorder %s21, 1
      %s366 = scalar_select %p365, %s21, 1
      %s367 = smul.addr %s366, 2
      %s368 = smul.addr %s367, 8
      %s369 = scalar_lea.vmem %s0, %s368
      %p370 = scmp.lt.s32.totalorder %s21, 1
      %s371 = scalar_select %p370, %s21, 1
      %s372 = smul.addr %s371, 2
      %s373 = smul.addr %s372, 8
      %s374 = scalar_lea.vmem %s1, %s373
      %p375 = scmp.lt.s32.totalorder %s21, 1
      %s376 = scalar_select %p375, %s21, 1
      %s377 = smul.addr %s376, 2
      %s378 = smul.addr %s377, 8
      %s379 = scalar_lea.vmem %s10, %s378
      %v380 = vld [vmem:[%s2] sm:$0xff]
      %v381 = vld [vmem:[%s3] sm:$0xff]
      %v382 = vld [vmem:[%s4] sm:$0xff]
      %v383 = vld [vmem:[%s5] sm:$0xff]
      %v384 = vld [vmem:[%s6] sm:$0xff]
      %v385 = vld [vmem:[%s7] sm:$0xff]
      %v386 = vld [vmem:[%s8] sm:$0xff]
      %v387 = vld [vmem:[%s9] sm:$0xff]
      %v388 = vld [vmem:[%s369] sm:$0xff]
      %v389 = vld [vmem:[%s369 + $0x8] sm:$0xff]
      %v390 = vld [vmem:[%s374] sm:$0xff]
      %v391 = vld [vmem:[%s374 + $0x8] sm:$0xff]
      %392 = vxpose.xlu0.b32.start [1/16] %v388, 128
      %393 = vxpose.xlu0.b32.cont [2/16] 0.0, 128
      %394 = vxpose.xlu0.b32.cont [3/16] 0.0, 128
      %395 = vxpose.xlu0.b32.cont [4/16] 0.0, 128
      %396 = vxpose.xlu0.b32.cont [5/16] 0.0, 128
      %397 = vxpose.xlu0.b32.cont [6/16] 0.0, 128
      %398 = vxpose.xlu0.b32.cont [7/16] 0.0, 128
      %399 = vxpose.xlu0.b32.cont [8/16] 0.0, 128
      %400 = vxpose.xlu0.b32.cont [9/16] 0.0, 128
      %401 = vxpose.xlu0.b32.cont [10/16] 0.0, 128
      %402 = vxpose.xlu0.b32.cont [11/16] 0.0, 128
      %403 = vxpose.xlu0.b32.cont [12/16] 0.0, 128
      %404 = vxpose.xlu0.b32.cont [13/16] 0.0, 128
      %405 = vxpose.xlu0.b32.cont [14/16] 0.0, 128
      %406 = vxpose.xlu0.b32.cont [15/16] 0.0, 128
      %407 = vxpose.xlu0.b32.end [16/16] 0.0, 128
      %v408 = vpop.trf.xlu0
      %v409 = vpop.trf.xlu0
      %v410 = vpop.trf.xlu0
      %v411 = vpop.trf.xlu0
      %v412 = vpop.trf.xlu0
      %v413 = vpop.trf.xlu0
      %v414 = vpop.trf.xlu0
      %v415 = vpop.trf.xlu0
      %v416 = vpop.trf.xlu0
      %v417 = vpop.trf.xlu0
      %v418 = vpop.trf.xlu0
      %v419 = vpop.trf.xlu0
      %v420 = vpop.trf.xlu0
      %v421 = vpop.trf.xlu0
      %v422 = vpop.trf.xlu0
      %v423 = vpop.trf.xlu0
      %424 = vxpose.xlu0.b32.start [1/16] %v389, 128
      %425 = vxpose.xlu0.b32.cont [2/16] 0.0, 128
      %426 = vxpose.xlu0.b32.cont [3/16] 0.0, 128
      %427 = vxpose.xlu0.b32.cont [4/16] 0.0, 128
      %428 = vxpose.xlu0.b32.cont [5/16] 0.0, 128
      %429 = vxpose.xlu0.b32.cont [6/16] 0.0, 128
      %430 = vxpose.xlu0.b32.cont [7/16] 0.0, 128
      %431 = vxpose.xlu0.b32.cont [8/16] 0.0, 128
      %432 = vxpose.xlu0.b32.cont [9/16] 0.0, 128
      %433 = vxpose.xlu0.b32.cont [10/16] 0.0, 128
      %434 = vxpose.xlu0.b32.cont [11/16] 0.0, 128
      %435 = vxpose.xlu0.b32.cont [12/16] 0.0, 128
      %436 = vxpose.xlu0.b32.cont [13/16] 0.0, 128
      %437 = vxpose.xlu0.b32.cont [14/16] 0.0, 128
      %438 = vxpose.xlu0.b32.cont [15/16] 0.0, 128
      %439 = vxpose.xlu0.b32.end [16/16] 0.0, 128
      %v440 = vpop.trf.xlu0
      %v441 = vpop.trf.xlu0
      %v442 = vpop.trf.xlu0
      %v443 = vpop.trf.xlu0
      %v444 = vpop.trf.xlu0
      %v445 = vpop.trf.xlu0
      %v446 = vpop.trf.xlu0
      %v447 = vpop.trf.xlu0
      %v448 = vpop.trf.xlu0
      %v449 = vpop.trf.xlu0
      %v450 = vpop.trf.xlu0
      %v451 = vpop.trf.xlu0
      %v452 = vpop.trf.xlu0
      %v453 = vpop.trf.xlu0
      %v454 = vpop.trf.xlu0
      %v455 = vpop.trf.xlu0
      %vm456 = vcmask 64512
      %v458 = vsel %vm456, %v408, 0
      %v461 = vsel %vm456, %v409, 0
      %v464 = vsel %vm456, %v410, 0
      %v467 = vsel %vm456, %v411, 0
      %v470 = vsel %vm456, %v412, 0
      %v473 = vsel %vm456, %v413, 0
      %v476 = vsel %vm456, %v414, 0
      %v479 = vsel %vm456, %v415, 0
      %v482 = vsel %vm456, %v416, 0
      %v485 = vsel %vm456, %v417, 0
      %v488 = vsel %vm456, %v418, 0
      %v491 = vsel %vm456, %v419, 0
      %v494 = vsel %vm456, %v420, 0
      %v497 = vsel %vm456, %v421, 0
      %v500 = vsel %vm456, %v422, 0
      %v503 = vsel %vm456, %v423, 0
      %v506 = vsel %vm456, %v440, 0
      %v509 = vsel %vm456, %v441, 0
      %v512 = vsel %vm456, %v442, 0
      %v515 = vsel %vm456, %v443, 0
      %v518 = vsel %vm456, %v444, 0
      %v521 = vsel %vm456, %v445, 0
      %v524 = vsel %vm456, %v446, 0
      %v527 = vsel %vm456, %v447, 0
      %v530 = vsel %vm456, %v448, 0
      %v533 = vsel %vm456, %v449, 0
      %v536 = vsel %vm456, %v450, 0
      %v539 = vsel %vm456, %v451, 0
      %v542 = vsel %vm456, %v452, 0
      %v545 = vsel %vm456, %v453, 0
      %v548 = vsel %vm456, %v454, 0
      %v551 = vsel %vm456, %v455, 0
      %553 = vmatprep.subr.mxu0 0.0
      %554 = vmatpush1.msra.mxu0 0.0
      %555 = vmatprep.subr.mxu0 0.0
      %556 = vmatpush1.msra.mxu0 0.0
      %557 = vmatprep.subr.mxu0 0.0
      %558 = vmatpush1.msra.mxu0 0.0
      %559 = vmatprep.subr.mxu0 0.0
      %560 = vmatpush1.msra.mxu0 0.0
      %561 = vmatprep.subr.mxu0 0.0
      %562 = vmatpush1.msra.mxu0 0.0
      %563 = vmatprep.subr.mxu0 0.0
      %564 = vmatpush1.msra.mxu0 0.0
      %565 = vmatprep.subr.mxu0 0.0
      %566 = vmatpush1.msra.mxu0 0.0
      %567 = vmatprep.subr.mxu0 0.0
      %568 = vmatpush1.msra.mxu0 0.0
      %569 = vmatprep.subr.mxu0 0.0
      %570 = vmatpush1.msra.mxu0 0.0
      %571 = vmatprep.subr.mxu0 0.0
      %572 = vmatpush1.msra.mxu0 0.0
      %573 = vmatprep.subr.mxu0 0.0
      %574 = vmatpush1.msra.mxu0 0.0
      %575 = vmatprep.subr.mxu0 0.0
      %576 = vmatpush1.msra.mxu0 0.0
      %577 = vmatprep.subr.mxu0 0.0
      %578 = vmatpush1.msra.mxu0 0.0
      %579 = vmatprep.subr.mxu0 0.0
      %580 = vmatpush1.msra.mxu0 0.0
      %581 = vmatprep.subr.mxu0 0.0
      %582 = vmatpush1.msra.mxu0 0.0
      %583 = vmatprep.subr.mxu0 %v391
      %584 = vmatpush1.msra.mxu0 %v390
      %585 = vmatprep.subr.mxu0 0.0
      %586 = vmatpush2.msra.mxu0 0.0
      %587 = vmatprep.subr.mxu0 0.0
      %588 = vmatpush2.msra.mxu0 0.0
      %589 = vmatprep.subr.mxu0 0.0
      %590 = vmatpush2.msra.mxu0 0.0
      %591 = vmatprep.subr.mxu0 0.0
      %592 = vmatpush2.msra.mxu0 0.0
      %593 = vmatprep.subr.mxu0 0.0
      %594 = vmatpush2.msra.mxu0 0.0
      %595 = vmatprep.subr.mxu0 0.0
      %596 = vmatpush2.msra.mxu0 0.0
      %597 = vmatprep.subr.mxu0 0.0
      %598 = vmatpush2.msra.mxu0 0.0
      %599 = vmatprep.subr.mxu0 0.0
      %600 = vmatpush2.msra.mxu0 0.0
      %601 = vmatprep.subr.mxu0 0.0
      %602 = vmatpush2.msra.mxu0 0.0
      %603 = vmatprep.subr.mxu0 0.0
      %604 = vmatpush2.msra.mxu0 0.0
      %605 = vmatprep.subr.mxu0 0.0
      %606 = vmatpush2.msra.mxu0 0.0
      %607 = vmatprep.subr.mxu0 0.0
      %608 = vmatpush2.msra.mxu0 0.0
      %609 = vmatprep.subr.mxu0 0.0
      %610 = vmatpush2.msra.mxu0 0.0
      %611 = vmatprep.subr.mxu0 0.0
      %612 = vmatpush2.msra.mxu0 0.0
      %613 = vmatprep.subr.mxu0 0.0
      %614 = vmatpush2.msra.mxu0 0.0
      %615 = vmatprep.subr.mxu0 0.0
      %616 = vmatpush2.msra.mxu0 0.0
      %617 = vmatprep.mubr.f32.mxu0 0.0
      %618 = vmatmul.mubr.f32.gmra.mxu0 %v458
      %v619 = vpop.f32.mrf.mxu0
      %v620 = vadd.f32 0.0, %v619
      %v621 = vpop.f32.mrf.mxu0
      %v622 = vadd.f32 0.0, %v621
      %623 = vmatprep.mubr.f32.mxu0 0.0
      %624 = vmatmul.mubr.f32.gmra.mxu0 %v461
      %v625 = vpop.f32.mrf.mxu0
      %v626 = vadd.f32 0.0, %v625
      %v627 = vpop.f32.mrf.mxu0
      %v628 = vadd.f32 0.0, %v627
      %629 = vmatprep.mubr.f32.mxu0 0.0
      %630 = vmatmul.mubr.f32.gmra.mxu0 %v464
      %v631 = vpop.f32.mrf.mxu0
      %v632 = vadd.f32 0.0, %v631
      %v633 = vpop.f32.mrf.mxu0
      %v634 = vadd.f32 0.0, %v633
      %635 = vmatprep.mubr.f32.mxu0 0.0
      %636 = vmatmul.mubr.f32.gmra.mxu0 %v467
      %v637 = vpop.f32.mrf.mxu0
      %v638 = vadd.f32 0.0, %v637
      %v639 = vpop.f32.mrf.mxu0
      %v640 = vadd.f32 0.0, %v639
      %641 = vmatprep.mubr.f32.mxu0 0.0
      %642 = vmatmul.mubr.f32.gmra.mxu0 %v470
      %v643 = vpop.f32.mrf.mxu0
      %v644 = vadd.f32 0.0, %v643
      %v645 = vpop.f32.mrf.mxu0
      %v646 = vadd.f32 0.0, %v645
      %647 = vmatprep.mubr.f32.mxu0 0.0
      %648 = vmatmul.mubr.f32.gmra.mxu0 %v473
      %v649 = vpop.f32.mrf.mxu0
      %v650 = vadd.f32 0.0, %v649
      %v651 = vpop.f32.mrf.mxu0
      %v652 = vadd.f32 0.0, %v651
      %653 = vmatprep.mubr.f32.mxu0 0.0
      %654 = vmatmul.mubr.f32.gmra.mxu0 %v476
      %v655 = vpop.f32.mrf.mxu0
      %v656 = vadd.f32 0.0, %v655
      %v657 = vpop.f32.mrf.mxu0
      %v658 = vadd.f32 0.0, %v657
      %659 = vmatprep.mubr.f32.mxu0 0.0
      %660 = vmatmul.mubr.f32.gmra.mxu0 %v479
      %v661 = vpop.f32.mrf.mxu0
      %v662 = vadd.f32 0.0, %v661
      %v663 = vpop.f32.mrf.mxu0
      %v664 = vadd.f32 0.0, %v663
      %665 = vmatprep.mubr.f32.mxu0 0.0
      %666 = vmatmul.mubr.f32.gmra.mxu0 %v482
      %v667 = vpop.f32.mrf.mxu0
      %v668 = vadd.f32 0.0, %v667
      %v669 = vpop.f32.mrf.mxu0
      %v670 = vadd.f32 0.0, %v669
      %671 = vmatprep.mubr.f32.mxu0 0.0
      %672 = vmatmul.mubr.f32.gmra.mxu0 %v485
      %v673 = vpop.f32.mrf.mxu0
      %v674 = vadd.f32 0.0, %v673
      %v675 = vpop.f32.mrf.mxu0
      %v676 = vadd.f32 0.0, %v675
      %677 = vmatprep.mubr.f32.mxu0 0.0
      %678 = vmatmul.mubr.f32.gmra.mxu0 %v488
      %v679 = vpop.f32.mrf.mxu0
      %v680 = vadd.f32 0.0, %v679
      %v681 = vpop.f32.mrf.mxu0
      %v682 = vadd.f32 0.0, %v681
      %683 = vmatprep.mubr.f32.mxu0 0.0
      %684 = vmatmul.mubr.f32.gmra.mxu0 %v491
      %v685 = vpop.f32.mrf.mxu0
      %v686 = vadd.f32 0.0, %v685
      %v687 = vpop.f32.mrf.mxu0
      %v688 = vadd.f32 0.0, %v687
      %689 = vmatprep.mubr.f32.mxu0 0.0
      %690 = vmatmul.mubr.f32.gmra.mxu0 %v494
      %v691 = vpop.f32.mrf.mxu0
      %v692 = vadd.f32 0.0, %v691
      %v693 = vpop.f32.mrf.mxu0
      %v694 = vadd.f32 0.0, %v693
      %695 = vmatprep.mubr.f32.mxu0 0.0
      %696 = vmatmul.mubr.f32.gmra.mxu0 %v497
      %v697 = vpop.f32.mrf.mxu0
      %v698 = vadd.f32 0.0, %v697
      %v699 = vpop.f32.mrf.mxu0
      %v700 = vadd.f32 0.0, %v699
      %701 = vmatprep.mubr.f32.mxu0 0.0
      %702 = vmatmul.mubr.f32.gmra.mxu0 %v500
      %v703 = vpop.f32.mrf.mxu0
      %v704 = vadd.f32 0.0, %v703
      %v705 = vpop.f32.mrf.mxu0
      %v706 = vadd.f32 0.0, %v705
      %707 = vmatprep.mubr.f32.mxu0 0.0
      %708 = vmatmul.mubr.f32.gmra.mxu0 %v503
      %v709 = vpop.f32.mrf.mxu0
      %v710 = vadd.f32 0.0, %v709
      %v711 = vpop.f32.mrf.mxu0
      %v712 = vadd.f32 0.0, %v711
      %713 = vmatprep.mubr.f32.mxu0 0.0
      %714 = vmatmul.mubr.f32.gmra.mxu0 %v506
      %v715 = vpop.f32.mrf.mxu0
      %v716 = vadd.f32 0.0, %v715
      %v717 = vpop.f32.mrf.mxu0
      %v718 = vadd.f32 0.0, %v717
      %719 = vmatprep.mubr.f32.mxu0 0.0
      %720 = vmatmul.mubr.f32.gmra.mxu0 %v509
      %v721 = vpop.f32.mrf.mxu0
      %v722 = vadd.f32 0.0, %v721
      %v723 = vpop.f32.mrf.mxu0
      %v724 = vadd.f32 0.0, %v723
      %725 = vmatprep.mubr.f32.mxu0 0.0
      %726 = vmatmul.mubr.f32.gmra.mxu0 %v512
      %v727 = vpop.f32.mrf.mxu0
      %v728 = vadd.f32 0.0, %v727
      %v729 = vpop.f32.mrf.mxu0
      %v730 = vadd.f32 0.0, %v729
      %731 = vmatprep.mubr.f32.mxu0 0.0
      %732 = vmatmul.mubr.f32.gmra.mxu0 %v515
      %v733 = vpop.f32.mrf.mxu0
      %v734 = vadd.f32 0.0, %v733
      %v735 = vpop.f32.mrf.mxu0
      %v736 = vadd.f32 0.0, %v735
      %737 = vmatprep.mubr.f32.mxu0 0.0
      %738 = vmatmul.mubr.f32.gmra.mxu0 %v518
      %v739 = vpop.f32.mrf.mxu0
      %v740 = vadd.f32 0.0, %v739
      %v741 = vpop.f32.mrf.mxu0
      %v742 = vadd.f32 0.0, %v741
      %743 = vmatprep.mubr.f32.mxu0 0.0
      %744 = vmatmul.mubr.f32.gmra.mxu0 %v521
      %v745 = vpop.f32.mrf.mxu0
      %v746 = vadd.f32 0.0, %v745
      %v747 = vpop.f32.mrf.mxu0
      %v748 = vadd.f32 0.0, %v747
      %749 = vmatprep.mubr.f32.mxu0 0.0
      %750 = vmatmul.mubr.f32.gmra.mxu0 %v524
      %v751 = vpop.f32.mrf.mxu0
      %v752 = vadd.f32 0.0, %v751
      %v753 = vpop.f32.mrf.mxu0
      %v754 = vadd.f32 0.0, %v753
      %755 = vmatprep.mubr.f32.mxu0 0.0
      %756 = vmatmul.mubr.f32.gmra.mxu0 %v527
      %v757 = vpop.f32.mrf.mxu0
      %v758 = vadd.f32 0.0, %v757
      %v759 = vpop.f32.mrf.mxu0
      %v760 = vadd.f32 0.0, %v759
      %761 = vmatprep.mubr.f32.mxu0 0.0
      %762 = vmatmul.mubr.f32.gmra.mxu0 %v530
      %v763 = vpop.f32.mrf.mxu0
      %v764 = vadd.f32 0.0, %v763
      %v765 = vpop.f32.mrf.mxu0
      %v766 = vadd.f32 0.0, %v765
      %767 = vmatprep.mubr.f32.mxu0 0.0
      %768 = vmatmul.mubr.f32.gmra.mxu0 %v533
      %v769 = vpop.f32.mrf.mxu0
      %v770 = vadd.f32 0.0, %v769
      %v771 = vpop.f32.mrf.mxu0
      %v772 = vadd.f32 0.0, %v771
      %773 = vmatprep.mubr.f32.mxu0 0.0
      %774 = vmatmul.mubr.f32.gmra.mxu0 %v536
      %v775 = vpop.f32.mrf.mxu0
      %v776 = vadd.f32 0.0, %v775
      %v777 = vpop.f32.mrf.mxu0
      %v778 = vadd.f32 0.0, %v777
      %779 = vmatprep.mubr.f32.mxu0 0.0
      %780 = vmatmul.mubr.f32.gmra.mxu0 %v539
      %v781 = vpop.f32.mrf.mxu0
      %v782 = vadd.f32 0.0, %v781
      %v783 = vpop.f32.mrf.mxu0
      %v784 = vadd.f32 0.0, %v783
      %785 = vmatprep.mubr.f32.mxu0 0.0
      %786 = vmatmul.mubr.f32.gmra.mxu0 %v542
      %v787 = vpop.f32.mrf.mxu0
      %v788 = vadd.f32 0.0, %v787
      %v789 = vpop.f32.mrf.mxu0
      %v790 = vadd.f32 0.0, %v789
      %791 = vmatprep.mubr.f32.mxu0 0.0
      %792 = vmatmul.mubr.f32.gmra.mxu0 %v545
      %v793 = vpop.f32.mrf.mxu0
      %v794 = vadd.f32 0.0, %v793
      %v795 = vpop.f32.mrf.mxu0
      %v796 = vadd.f32 0.0, %v795
      %797 = vmatprep.mubr.f32.mxu0 0.0
      %798 = vmatmul.mubr.f32.gmra.mxu0 %v548
      %v799 = vpop.f32.mrf.mxu0
      %v800 = vadd.f32 0.0, %v799
      %v801 = vpop.f32.mrf.mxu0
      %v802 = vadd.f32 0.0, %v801
      %803 = vmatprep.mubr.f32.mxu0 0.0
      %804 = vmatmul.mubr.f32.gmra.mxu0 %v551
      %v805 = vpop.f32.mrf.mxu0
      %v806 = vadd.f32 0.0, %v805
      %v807 = vpop.f32.mrf.mxu0
      %v808 = vadd.f32 0.0, %v807
      %809 = vdwg.mxu0
      %v810 = vmax.f32 %v620, %v622
      %811 = vmax.xlane.f32.xlu0 %v810
      %v812 = vpop.xlane.xlu0 %811
      %v813 = vmax.f32 %v626, %v628
      %814 = vmax.xlane.f32.xlu0 %v813
      %v815 = vpop.xlane.xlu0 %814
      %v816 = vmax.f32 %v632, %v634
      %817 = vmax.xlane.f32.xlu0 %v816
      %v818 = vpop.xlane.xlu0 %817
      %v819 = vmax.f32 %v638, %v640
      %820 = vmax.xlane.f32.xlu0 %v819
      %v821 = vpop.xlane.xlu0 %820
      %v822 = vmax.f32 %v644, %v646
      %823 = vmax.xlane.f32.xlu0 %v822
      %v824 = vpop.xlane.xlu0 %823
      %v825 = vmax.f32 %v650, %v652
      %826 = vmax.xlane.f32.xlu0 %v825
      %v827 = vpop.xlane.xlu0 %826
      %v828 = vmax.f32 %v656, %v658
      %829 = vmax.xlane.f32.xlu0 %v828
      %v830 = vpop.xlane.xlu0 %829
      %v831 = vmax.f32 %v662, %v664
      %832 = vmax.xlane.f32.xlu0 %v831
      %v833 = vpop.xlane.xlu0 %832
      %v834 = vmax.f32 %v668, %v670
      %835 = vmax.xlane.f32.xlu0 %v834
      %v836 = vpop.xlane.xlu0 %835
      %v837 = vmax.f32 %v674, %v676
      %838 = vmax.xlane.f32.xlu0 %v837
      %v839 = vpop.xlane.xlu0 %838
      %v840 = vmax.f32 %v680, %v682
      %841 = vmax.xlane.f32.xlu0 %v840
      %v842 = vpop.xlane.xlu0 %841
      %v843 = vmax.f32 %v686, %v688
      %844 = vmax.xlane.f32.xlu0 %v843
      %v845 = vpop.xlane.xlu0 %844
      %v846 = vmax.f32 %v692, %v694
      %847 = vmax.xlane.f32.xlu0 %v846
      %v848 = vpop.xlane.xlu0 %847
      %v849 = vmax.f32 %v698, %v700
      %850 = vmax.xlane.f32.xlu0 %v849
      %v851 = vpop.xlane.xlu0 %850
      %v852 = vmax.f32 %v704, %v706
      %853 = vmax.xlane.f32.xlu0 %v852
      %v854 = vpop.xlane.xlu0 %853
      %v855 = vmax.f32 %v710, %v712
      %856 = vmax.xlane.f32.xlu0 %v855
      %v857 = vpop.xlane.xlu0 %856
      %v858 = vmax.f32 %v716, %v718
      %859 = vmax.xlane.f32.xlu0 %v858
      %v860 = vpop.xlane.xlu0 %859
      %v861 = vmax.f32 %v722, %v724
      %862 = vmax.xlane.f32.xlu0 %v861
      %v863 = vpop.xlane.xlu0 %862
      %v864 = vmax.f32 %v728, %v730
      %865 = vmax.xlane.f32.xlu0 %v864
      %v866 = vpop.xlane.xlu0 %865
      %v867 = vmax.f32 %v734, %v736
      %868 = vmax.xlane.f32.xlu0 %v867
      %v869 = vpop.xlane.xlu0 %868
      %v870 = vmax.f32 %v740, %v742
      %871 = vmax.xlane.f32.xlu0 %v870
      %v872 = vpop.xlane.xlu0 %871
      %v873 = vmax.f32 %v746, %v748
      %874 = vmax.xlane.f32.xlu0 %v873
      %v875 = vpop.xlane.xlu0 %874
      %v876 = vmax.f32 %v752, %v754
      %877 = vmax.xlane.f32.xlu0 %v876
      %v878 = vpop.xlane.xlu0 %877
      %v879 = vmax.f32 %v758, %v760
      %880 = vmax.xlane.f32.xlu0 %v879
      %v881 = vpop.xlane.xlu0 %880
      %v882 = vmax.f32 %v764, %v766
      %883 = vmax.xlane.f32.xlu0 %v882
      %v884 = vpop.xlane.xlu0 %883
      %v885 = vmax.f32 %v770, %v772
      %886 = vmax.xlane.f32.xlu0 %v885
      %v887 = vpop.xlane.xlu0 %886
      %v888 = vmax.f32 %v776, %v778
      %889 = vmax.xlane.f32.xlu0 %v888
      %v890 = vpop.xlane.xlu0 %889
      %v891 = vmax.f32 %v782, %v784
      %892 = vmax.xlane.f32.xlu0 %v891
      %v893 = vpop.xlane.xlu0 %892
      %v894 = vmax.f32 %v788, %v790
      %895 = vmax.xlane.f32.xlu0 %v894
      %v896 = vpop.xlane.xlu0 %895
      %v897 = vmax.f32 %v794, %v796
      %898 = vmax.xlane.f32.xlu0 %v897
      %v899 = vpop.xlane.xlu0 %898
      %v900 = vmax.f32 %v800, %v802
      %901 = vmax.xlane.f32.xlu0 %v900
      %v902 = vpop.xlane.xlu0 %901
      %v903 = vmax.f32 %v806, %v808
      %904 = vmax.xlane.f32.xlu0 %v903
      %v905 = vpop.xlane.xlu0 %904
      %v906 = vsub.f32 %v620, %v812
      %v907 = vsub.f32 %v622, %v812
      %v908 = vsub.f32 %v626, %v815
      %v909 = vsub.f32 %v628, %v815
      %v910 = vsub.f32 %v632, %v818
      %v911 = vsub.f32 %v634, %v818
      %v912 = vsub.f32 %v638, %v821
      %v913 = vsub.f32 %v640, %v821
      %v914 = vsub.f32 %v644, %v824
      %v915 = vsub.f32 %v646, %v824
      %v916 = vsub.f32 %v650, %v827
      %v917 = vsub.f32 %v652, %v827
      %v918 = vsub.f32 %v656, %v830
      %v919 = vsub.f32 %v658, %v830
      %v920 = vsub.f32 %v662, %v833
      %v921 = vsub.f32 %v664, %v833
      %v922 = vsub.f32 %v668, %v836
      %v923 = vsub.f32 %v670, %v836
      %v924 = vsub.f32 %v674, %v839
      %v925 = vsub.f32 %v676, %v839
      %v926 = vsub.f32 %v680, %v842
      %v927 = vsub.f32 %v682, %v842
      %v928 = vsub.f32 %v686, %v845
      %v929 = vsub.f32 %v688, %v845
      %v930 = vsub.f32 %v692, %v848
      %v931 = vsub.f32 %v694, %v848
      %v932 = vsub.f32 %v698, %v851
      %v933 = vsub.f32 %v700, %v851
      %v934 = vsub.f32 %v704, %v854
      %v935 = vsub.f32 %v706, %v854
      %v936 = vsub.f32 %v710, %v857
      %v937 = vsub.f32 %v712, %v857
      %v938 = vsub.f32 %v716, %v860
      %v939 = vsub.f32 %v718, %v860
      %v940 = vsub.f32 %v722, %v863
      %v941 = vsub.f32 %v724, %v863
      %v942 = vsub.f32 %v728, %v866
      %v943 = vsub.f32 %v730, %v866
      %v944 = vsub.f32 %v734, %v869
      %v945 = vsub.f32 %v736, %v869
      %v946 = vsub.f32 %v740, %v872
      %v947 = vsub.f32 %v742, %v872
      %v948 = vsub.f32 %v746, %v875
      %v949 = vsub.f32 %v748, %v875
      %v950 = vsub.f32 %v752, %v878
      %v951 = vsub.f32 %v754, %v878
      %v952 = vsub.f32 %v758, %v881
      %v953 = vsub.f32 %v760, %v881
      %v954 = vsub.f32 %v764, %v884
      %v955 = vsub.f32 %v766, %v884
      %v956 = vsub.f32 %v770, %v887
      %v957 = vsub.f32 %v772, %v887
      %v958 = vsub.f32 %v776, %v890
      %v959 = vsub.f32 %v778, %v890
      %v960 = vsub.f32 %v782, %v893
      %v961 = vsub.f32 %v784, %v893
      %v962 = vsub.f32 %v788, %v896
      %v963 = vsub.f32 %v790, %v896
      %v964 = vsub.f32 %v794, %v899
      %v965 = vsub.f32 %v796, %v899
      %v966 = vsub.f32 %v800, %v902
      %v967 = vsub.f32 %v802, %v902
      %v968 = vsub.f32 %v806, %v905
      %v969 = vsub.f32 %v808, %v905
      %v970 = vmul.f32 %v906, 1.442695
      %v971 = vpow.pop %v970
      %v972 = vmul.f32 %v907, 1.442695
      %v973 = vpow.pop %v972
      %v974 = vmul.f32 %v908, 1.442695
      %v975 = vpow.pop %v974
      %v976 = vmul.f32 %v909, 1.442695
      %v977 = vpow.pop %v976
      %v978 = vmul.f32 %v910, 1.442695
      %v979 = vpow.pop %v978
      %v980 = vmul.f32 %v911, 1.442695
      %v981 = vpow.pop %v980
      %v982 = vmul.f32 %v912, 1.442695
      %v983 = vpow.pop %v982
      %v984 = vmul.f32 %v913, 1.442695
      %v985 = vpow.pop %v984
      %v986 = vmul.f32 %v914, 1.442695
      %v987 = vpow.pop %v986
      %v988 = vmul.f32 %v915, 1.442695
      %v989 = vpow.pop %v988
      %v990 = vmul.f32 %v916, 1.442695
      %v991 = vpow.pop %v990
      %v992 = vmul.f32 %v917, 1.442695
      %v993 = vpow.pop %v992
      %v994 = vmul.f32 %v918, 1.442695
      %v995 = vpow.pop %v994
      %v996 = vmul.f32 %v919, 1.442695
      %v997 = vpow.pop %v996
      %v998 = vmul.f32 %v920, 1.442695
      %v999 = vpow.pop %v998
      %v1000 = vmul.f32 %v921, 1.442695
      %v1001 = vpow.pop %v1000
      %v1002 = vmul.f32 %v922, 1.442695
      %v1003 = vpow.pop %v1002
      %v1004 = vmul.f32 %v923, 1.442695
      %v1005 = vpow.pop %v1004
      %v1006 = vmul.f32 %v924, 1.442695
      %v1007 = vpow.pop %v1006
      %v1008 = vmul.f32 %v925, 1.442695
      %v1009 = vpow.pop %v1008
      %v1010 = vmul.f32 %v926, 1.442695
      %v1011 = vpow.pop %v1010
      %v1012 = vmul.f32 %v927, 1.442695
      %v1013 = vpow.pop %v1012
      %v1014 = vmul.f32 %v928, 1.442695
      %v1015 = vpow.pop %v1014
      %v1016 = vmul.f32 %v929, 1.442695
      %v1017 = vpow.pop %v1016
      %v1018 = vmul.f32 %v930, 1.442695
      %v1019 = vpow.pop %v1018
      %v1020 = vmul.f32 %v931, 1.442695
      %v1021 = vpow.pop %v1020
      %v1022 = vmul.f32 %v932, 1.442695
      %v1023 = vpow.pop %v1022
      %v1024 = vmul.f32 %v933, 1.442695
      %v1025 = vpow.pop %v1024
      %v1026 = vmul.f32 %v934, 1.442695
      %v1027 = vpow.pop %v1026
      %v1028 = vmul.f32 %v935, 1.442695
      %v1029 = vpow.pop %v1028
      %v1030 = vmul.f32 %v936, 1.442695
      %v1031 = vpow.pop %v1030
      %v1032 = vmul.f32 %v937, 1.442695
      %v1033 = vpow.pop %v1032
      %v1034 = vmul.f32 %v938, 1.442695
      %v1035 = vpow.pop %v1034
      %v1036 = vmul.f32 %v939, 1.442695
      %v1037 = vpow.pop %v1036
      %v1038 = vmul.f32 %v940, 1.442695
      %v1039 = vpow.pop %v1038
      %v1040 = vmul.f32 %v941, 1.442695
      %v1041 = vpow.pop %v1040
      %v1042 = vmul.f32 %v942, 1.442695
      %v1043 = vpow.pop %v1042
      %v1044 = vmul.f32 %v943, 1.442695
      %v1045 = vpow.pop %v1044
      %v1046 = vmul.f32 %v944, 1.442695
      %v1047 = vpow.pop %v1046
      %v1048 = vmul.f32 %v945, 1.442695
      %v1049 = vpow.pop %v1048
      %v1050 = vmul.f32 %v946, 1.442695
      %v1051 = vpow.pop %v1050
      %v1052 = vmul.f32 %v947, 1.442695
      %v1053 = vpow.pop %v1052
      %v1054 = vmul.f32 %v948, 1.442695
      %v1055 = vpow.pop %v1054
      %v1056 = vmul.f32 %v949, 1.442695
      %v1057 = vpow.pop %v1056
      %v1058 = vmul.f32 %v950, 1.442695
      %v1059 = vpow.pop %v1058
      %v1060 = vmul.f32 %v951, 1.442695
      %v1061 = vpow.pop %v1060
      %v1062 = vmul.f32 %v952, 1.442695
      %v1063 = vpow.pop %v1062
      %v1064 = vmul.f32 %v953, 1.442695
      %v1065 = vpow.pop %v1064
      %v1066 = vmul.f32 %v954, 1.442695
      %v1067 = vpow.pop %v1066
      %v1068 = vmul.f32 %v955, 1.442695
      %v1069 = vpow.pop %v1068
      %v1070 = vmul.f32 %v956, 1.442695
      %v1071 = vpow.pop %v1070
      %v1072 = vmul.f32 %v957, 1.442695
      %v1073 = vpow.pop %v1072
      %v1074 = vmul.f32 %v958, 1.442695
      %v1075 = vpow.pop %v1074
      %v1076 = vmul.f32 %v959, 1.442695
      %v1077 = vpow.pop %v1076
      %v1078 = vmul.f32 %v960, 1.442695
      %v1079 = vpow.pop %v1078
      %v1080 = vmul.f32 %v961, 1.442695
      %v1081 = vpow.pop %v1080
      %v1082 = vmul.f32 %v962, 1.442695
      %v1083 = vpow.pop %v1082
      %v1084 = vmul.f32 %v963, 1.442695
      %v1085 = vpow.pop %v1084
      %v1086 = vmul.f32 %v964, 1.442695
      %v1087 = vpow.pop %v1086
      %v1088 = vmul.f32 %v965, 1.442695
      %v1089 = vpow.pop %v1088
      %v1090 = vmul.f32 %v966, 1.442695
      %v1091 = vpow.pop %v1090
      %v1092 = vmul.f32 %v967, 1.442695
      %v1093 = vpow.pop %v1092
      %v1094 = vmul.f32 %v968, 1.442695
      %v1095 = vpow.pop %v1094
      %v1096 = vmul.f32 %v969, 1.442695
      %v1097 = vpow.pop %v1096
      %v1098 = vadd.f32 %v971, %v973
      %1099 = vadd.xlane.f32.xlu0 %v1098
      %v1100 = vpop.xlane.xlu0 %1099
      %v1101 = vadd.f32 %v975, %v977
      %1102 = vadd.xlane.f32.xlu0 %v1101
      %v1103 = vpop.xlane.xlu0 %1102
      %v1104 = vadd.f32 %v979, %v981
      %1105 = vadd.xlane.f32.xlu0 %v1104
      %v1106 = vpop.xlane.xlu0 %1105
      %v1107 = vadd.f32 %v983, %v985
      %1108 = vadd.xlane.f32.xlu0 %v1107
      %v1109 = vpop.xlane.xlu0 %1108
      %v1110 = vadd.f32 %v987, %v989
      %1111 = vadd.xlane.f32.xlu0 %v1110
      %v1112 = vpop.xlane.xlu0 %1111
      %v1113 = vadd.f32 %v991, %v993
      %1114 = vadd.xlane.f32.xlu0 %v1113
      %v1115 = vpop.xlane.xlu0 %1114
      %v1116 = vadd.f32 %v995, %v997
      %1117 = vadd.xlane.f32.xlu0 %v1116
      %v1118 = vpop.xlane.xlu0 %1117
      %v1119 = vadd.f32 %v999, %v1001
      %1120 = vadd.xlane.f32.xlu0 %v1119
      %v1121 = vpop.xlane.xlu0 %1120
      %v1122 = vadd.f32 %v1003, %v1005
      %1123 = vadd.xlane.f32.xlu0 %v1122
      %v1124 = vpop.xlane.xlu0 %1123
      %v1125 = vadd.f32 %v1007, %v1009
      %1126 = vadd.xlane.f32.xlu0 %v1125
      %v1127 = vpop.xlane.xlu0 %1126
      %v1128 = vadd.f32 %v1011, %v1013
      %1129 = vadd.xlane.f32.xlu0 %v1128
      %v1130 = vpop.xlane.xlu0 %1129
      %v1131 = vadd.f32 %v1015, %v1017
      %1132 = vadd.xlane.f32.xlu0 %v1131
      %v1133 = vpop.xlane.xlu0 %1132
      %v1134 = vadd.f32 %v1019, %v1021
      %1135 = vadd.xlane.f32.xlu0 %v1134
      %v1136 = vpop.xlane.xlu0 %1135
      %v1137 = vadd.f32 %v1023, %v1025
      %1138 = vadd.xlane.f32.xlu0 %v1137
      %v1139 = vpop.xlane.xlu0 %1138
      %v1140 = vadd.f32 %v1027, %v1029
      %1141 = vadd.xlane.f32.xlu0 %v1140
      %v1142 = vpop.xlane.xlu0 %1141
      %v1143 = vadd.f32 %v1031, %v1033
      %1144 = vadd.xlane.f32.xlu0 %v1143
      %v1145 = vpop.xlane.xlu0 %1144
      %v1146 = vadd.f32 %v1035, %v1037
      %1147 = vadd.xlane.f32.xlu0 %v1146
      %v1148 = vpop.xlane.xlu0 %1147
      %v1149 = vadd.f32 %v1039, %v1041
      %1150 = vadd.xlane.f32.xlu0 %v1149
      %v1151 = vpop.xlane.xlu0 %1150
      %v1152 = vadd.f32 %v1043, %v1045
      %1153 = vadd.xlane.f32.xlu0 %v1152
      %v1154 = vpop.xlane.xlu0 %1153
      %v1155 = vadd.f32 %v1047, %v1049
      %1156 = vadd.xlane.f32.xlu0 %v1155
      %v1157 = vpop.xlane.xlu0 %1156
      %v1158 = vadd.f32 %v1051, %v1053
      %1159 = vadd.xlane.f32.xlu0 %v1158
      %v1160 = vpop.xlane.xlu0 %1159
      %v1161 = vadd.f32 %v1055, %v1057
      %1162 = vadd.xlane.f32.xlu0 %v1161
      %v1163 = vpop.xlane.xlu0 %1162
      %v1164 = vadd.f32 %v1059, %v1061
      %1165 = vadd.xlane.f32.xlu0 %v1164
      %v1166 = vpop.xlane.xlu0 %1165
      %v1167 = vadd.f32 %v1063, %v1065
      %1168 = vadd.xlane.f32.xlu0 %v1167
      %v1169 = vpop.xlane.xlu0 %1168
      %v1170 = vadd.f32 %v1067, %v1069
      %1171 = vadd.xlane.f32.xlu0 %v1170
      %v1172 = vpop.xlane.xlu0 %1171
      %v1173 = vadd.f32 %v1071, %v1073
      %1174 = vadd.xlane.f32.xlu0 %v1173
      %v1175 = vpop.xlane.xlu0 %1174
      %v1176 = vadd.f32 %v1075, %v1077
      %1177 = vadd.xlane.f32.xlu0 %v1176
      %v1178 = vpop.xlane.xlu0 %1177
      %v1179 = vadd.f32 %v1079, %v1081
      %1180 = vadd.xlane.f32.xlu0 %v1179
      %v1181 = vpop.xlane.xlu0 %1180
      %v1182 = vadd.f32 %v1083, %v1085
      %1183 = vadd.xlane.f32.xlu0 %v1182
      %v1184 = vpop.xlane.xlu0 %1183
      %v1185 = vadd.f32 %v1087, %v1089
      %1186 = vadd.xlane.f32.xlu0 %v1185
      %v1187 = vpop.xlane.xlu0 %1186
      %v1188 = vadd.f32 %v1091, %v1093
      %1189 = vadd.xlane.f32.xlu0 %v1188
      %v1190 = vpop.xlane.xlu0 %1189
      %v1191 = vadd.f32 %v1095, %v1097
      %1192 = vadd.xlane.f32.xlu0 %v1191
      %v1193 = vpop.xlane.xlu0 %1192
      %v1194 = vrcp.pop %v1100
      %v1195 = vrcp.pop %v1103
      %v1196 = vrcp.pop %v1106
      %v1197 = vrcp.pop %v1109
      %v1198 = vrcp.pop %v1112
      %v1199 = vrcp.pop %v1115
      %v1200 = vrcp.pop %v1118
      %v1201 = vrcp.pop %v1121
      %v1202 = vrcp.pop %v1124
      %v1203 = vrcp.pop %v1127
      %v1204 = vrcp.pop %v1130
      %v1205 = vrcp.pop %v1133
      %v1206 = vrcp.pop %v1136
      %v1207 = vrcp.pop %v1139
      %v1208 = vrcp.pop %v1142
      %v1209 = vrcp.pop %v1145
      %v1210 = vrcp.pop %v1148
      %v1211 = vrcp.pop %v1151
      %v1212 = vrcp.pop %v1154
      %v1213 = vrcp.pop %v1157
      %v1214 = vrcp.pop %v1160
      %v1215 = vrcp.pop %v1163
      %v1216 = vrcp.pop %v1166
      %v1217 = vrcp.pop %v1169
      %v1218 = vrcp.pop %v1172
      %v1219 = vrcp.pop %v1175
      %v1220 = vrcp.pop %v1178
      %v1221 = vrcp.pop %v1181
      %v1222 = vrcp.pop %v1184
      %v1223 = vrcp.pop %v1187
      %v1224 = vrcp.pop %v1190
      %v1225 = vrcp.pop %v1193
      %v1226 = vmul.f32 %v971, %v1194
      %v1227 = vmul.f32 %v973, %v1194
      %v1228 = vmul.f32 %v975, %v1195
      %v1229 = vmul.f32 %v977, %v1195
      %v1230 = vmul.f32 %v979, %v1196
      %v1231 = vmul.f32 %v981, %v1196
      %v1232 = vmul.f32 %v983, %v1197
      %v1233 = vmul.f32 %v985, %v1197
      %v1234 = vmul.f32 %v987, %v1198
      %v1235 = vmul.f32 %v989, %v1198
      %v1236 = vmul.f32 %v991, %v1199
      %v1237 = vmul.f32 %v993, %v1199
      %v1238 = vmul.f32 %v995, %v1200
      %v1239 = vmul.f32 %v997, %v1200
      %v1240 = vmul.f32 %v999, %v1201
      %v1241 = vmul.f32 %v1001, %v1201
      %v1242 = vmul.f32 %v1003, %v1202
      %v1243 = vmul.f32 %v1005, %v1202
      %v1244 = vmul.f32 %v1007, %v1203
      %v1245 = vmul.f32 %v1009, %v1203
      %v1246 = vmul.f32 %v1011, %v1204
      %v1247 = vmul.f32 %v1013, %v1204
      %v1248 = vmul.f32 %v1015, %v1205
      %v1249 = vmul.f32 %v1017, %v1205
      %v1250 = vmul.f32 %v1019, %v1206
      %v1251 = vmul.f32 %v1021, %v1206
      %v1252 = vmul.f32 %v1023, %v1207
      %v1253 = vmul.f32 %v1025, %v1207
      %v1254 = vmul.f32 %v1027, %v1208
      %v1255 = vmul.f32 %v1029, %v1208
      %v1256 = vmul.f32 %v1031, %v1209
      %v1257 = vmul.f32 %v1033, %v1209
      %v1258 = vmul.f32 %v1035, %v1210
      %v1259 = vmul.f32 %v1037, %v1210
      %v1260 = vmul.f32 %v1039, %v1211
      %v1261 = vmul.f32 %v1041, %v1211
      %v1262 = vmul.f32 %v1043, %v1212
      %v1263 = vmul.f32 %v1045, %v1212
      %v1264 = vmul.f32 %v1047, %v1213
      %v1265 = vmul.f32 %v1049, %v1213
      %v1266 = vmul.f32 %v1051, %v1214
      %v1267 = vmul.f32 %v1053, %v1214
      %v1268 = vmul.f32 %v1055, %v1215
      %v1269 = vmul.f32 %v1057, %v1215
      %v1270 = vmul.f32 %v1059, %v1216
      %v1271 = vmul.f32 %v1061, %v1216
      %v1272 = vmul.f32 %v1063, %v1217
      %v1273 = vmul.f32 %v1065, %v1217
      %v1274 = vmul.f32 %v1067, %v1218
      %v1275 = vmul.f32 %v1069, %v1218
      %v1276 = vmul.f32 %v1071, %v1219
      %v1277 = vmul.f32 %v1073, %v1219
      %v1278 = vmul.f32 %v1075, %v1220
      %v1279 = vmul.f32 %v1077, %v1220
      %v1280 = vmul.f32 %v1079, %v1221
      %v1281 = vmul.f32 %v1081, %v1221
      %v1282 = vmul.f32 %v1083, %v1222
      %v1283 = vmul.f32 %v1085, %v1222
      %v1284 = vmul.f32 %v1087, %v1223
      %v1285 = vmul.f32 %v1089, %v1223
      %v1286 = vmul.f32 %v1091, %v1224
      %v1287 = vmul.f32 %v1093, %v1224
      %v1288 = vmul.f32 %v1095, %v1225
      %v1289 = vmul.f32 %v1097, %v1225
      %v1290 = vadd.f32 %v1226, %v1228
      %v1291 = vadd.f32 %v1290, %v1230
      %v1292 = vadd.f32 %v1291, %v1232
      %v1293 = vadd.f32 %v1292, %v1234
      %v1294 = vadd.f32 %v1293, %v1236
      %v1295 = vadd.f32 %v1294, %v1238
      %v1296 = vadd.f32 %v1295, %v1240
      %v1297 = vadd.f32 %v1296, %v1242
      %v1298 = vadd.f32 %v1297, %v1244
      %v1299 = vadd.f32 %v1298, %v1246
      %v1300 = vadd.f32 %v1299, %v1248
      %v1301 = vadd.f32 %v1300, %v1250
      %v1302 = vadd.f32 %v1301, %v1252
      %v1303 = vadd.f32 %v1302, %v1254
      %v1304 = vadd.f32 %v1303, %v1256
      %v1305 = vadd.f32 %v1304, %v1258
      %v1306 = vadd.f32 %v1305, %v1260
      %v1307 = vadd.f32 %v1306, %v1262
      %v1308 = vadd.f32 %v1307, %v1264
      %v1309 = vadd.f32 %v1308, %v1266
      %v1310 = vadd.f32 %v1309, %v1268
      %v1311 = vadd.f32 %v1310, %v1270
      %v1312 = vadd.f32 %v1311, %v1272
      %v1313 = vadd.f32 %v1312, %v1274
      %v1314 = vadd.f32 %v1313, %v1276
      %v1315 = vadd.f32 %v1314, %v1278
      %v1316 = vadd.f32 %v1315, %v1280
      %v1317 = vadd.f32 %v1316, %v1282
      %v1318 = vadd.f32 %v1317, %v1284
      %v1319 = vadd.f32 %v1318, %v1286
      %v1320 = vadd.f32 %v1319, %v1288
      %v1321 = vrot.slane %v1320, 4
      %v1322 = vadd.f32 %v1320, %v1321
      %v1323 = vrot.slane %v1322, 2
      %v1324 = vadd.f32 %v1322, %v1323
      %v1325 = vrot.slane %v1324, 1
      %v1326 = vadd.f32 %v1324, %v1325
      %v1327 = vadd.f32 %v1227, %v1229
      %v1328 = vadd.f32 %v1327, %v1231
      %v1329 = vadd.f32 %v1328, %v1233
      %v1330 = vadd.f32 %v1329, %v1235
      %v1331 = vadd.f32 %v1330, %v1237
      %v1332 = vadd.f32 %v1331, %v1239
      %v1333 = vadd.f32 %v1332, %v1241
      %v1334 = vadd.f32 %v1333, %v1243
      %v1335 = vadd.f32 %v1334, %v1245
      %v1336 = vadd.f32 %v1335, %v1247
      %v1337 = vadd.f32 %v1336, %v1249
      %v1338 = vadd.f32 %v1337, %v1251
      %v1339 = vadd.f32 %v1338, %v1253
      %v1340 = vadd.f32 %v1339, %v1255
      %v1341 = vadd.f32 %v1340, %v1257
      %v1342 = vadd.f32 %v1341, %v1259
      %v1343 = vadd.f32 %v1342, %v1261
      %v1344 = vadd.f32 %v1343, %v1263
      %v1345 = vadd.f32 %v1344, %v1265
      %v1346 = vadd.f32 %v1345, %v1267
      %v1347 = vadd.f32 %v1346, %v1269
      %v1348 = vadd.f32 %v1347, %v1271
      %v1349 = vadd.f32 %v1348, %v1273
      %v1350 = vadd.f32 %v1349, %v1275
      %v1351 = vadd.f32 %v1350, %v1277
      %v1352 = vadd.f32 %v1351, %v1279
      %v1353 = vadd.f32 %v1352, %v1281
      %v1354 = vadd.f32 %v1353, %v1283
      %v1355 = vadd.f32 %v1354, %v1285
      %v1356 = vadd.f32 %v1355, %v1287
      %v1357 = vadd.f32 %v1356, %v1289
      %v1358 = vrot.slane %v1357, 4
      %v1359 = vadd.f32 %v1357, %v1358
      %v1360 = vrot.slane %v1359, 2
      %v1361 = vadd.f32 %v1359, %v1360
      %v1362 = vrot.slane %v1361, 1
      %v1363 = vadd.f32 %v1361, %v1362
      %v1364 = vmax.f32 %v1326, 1e-12
      %v1365 = vmax.f32 %v1363, 1e-12
      %v1366 = vrcp.pop %v1364
      %v1367 = vrcp.pop %v1365
      %v1368 = vmul.f32 %v1226, %v1366
      %v1369 = vmul.f32 %v1227, %v1367
      %v1370 = vmul.f32 %v1228, %v1366
      %v1371 = vmul.f32 %v1229, %v1367
      %v1372 = vmul.f32 %v1230, %v1366
      %v1373 = vmul.f32 %v1231, %v1367
      %v1374 = vmul.f32 %v1232, %v1366
      %v1375 = vmul.f32 %v1233, %v1367
      %v1376 = vmul.f32 %v1234, %v1366
      %v1377 = vmul.f32 %v1235, %v1367
      %v1378 = vmul.f32 %v1236, %v1366
      %v1379 = vmul.f32 %v1237, %v1367
      %v1380 = vmul.f32 %v1238, %v1366
      %v1381 = vmul.f32 %v1239, %v1367
      %v1382 = vmul.f32 %v1240, %v1366
      %v1383 = vmul.f32 %v1241, %v1367
      %v1384 = vmul.f32 %v1242, %v1366
      %v1385 = vmul.f32 %v1243, %v1367
      %v1386 = vmul.f32 %v1244, %v1366
      %v1387 = vmul.f32 %v1245, %v1367
      %v1388 = vmul.f32 %v1246, %v1366
      %v1389 = vmul.f32 %v1247, %v1367
      %v1390 = vmul.f32 %v1248, %v1366
      %v1391 = vmul.f32 %v1249, %v1367
      %v1392 = vmul.f32 %v1250, %v1366
      %v1393 = vmul.f32 %v1251, %v1367
      %v1394 = vmul.f32 %v1252, %v1366
      %v1395 = vmul.f32 %v1253, %v1367
      %v1396 = vmul.f32 %v1254, %v1366
      %v1397 = vmul.f32 %v1255, %v1367
      %v1398 = vmul.f32 %v1256, %v1366
      %v1399 = vmul.f32 %v1257, %v1367
      %v1400 = vmul.f32 %v1258, %v1366
      %v1401 = vmul.f32 %v1259, %v1367
      %v1402 = vmul.f32 %v1260, %v1366
      %v1403 = vmul.f32 %v1261, %v1367
      %v1404 = vmul.f32 %v1262, %v1366
      %v1405 = vmul.f32 %v1263, %v1367
      %v1406 = vmul.f32 %v1264, %v1366
      %v1407 = vmul.f32 %v1265, %v1367
      %v1408 = vmul.f32 %v1266, %v1366
      %v1409 = vmul.f32 %v1267, %v1367
      %v1410 = vmul.f32 %v1268, %v1366
      %v1411 = vmul.f32 %v1269, %v1367
      %v1412 = vmul.f32 %v1270, %v1366
      %v1413 = vmul.f32 %v1271, %v1367
      %v1414 = vmul.f32 %v1272, %v1366
      %v1415 = vmul.f32 %v1273, %v1367
      %v1416 = vmul.f32 %v1274, %v1366
      %v1417 = vmul.f32 %v1275, %v1367
      %v1418 = vmul.f32 %v1276, %v1366
      %v1419 = vmul.f32 %v1277, %v1367
      %v1420 = vmul.f32 %v1278, %v1366
      %v1421 = vmul.f32 %v1279, %v1367
      %v1422 = vmul.f32 %v1280, %v1366
      %v1423 = vmul.f32 %v1281, %v1367
      %v1424 = vmul.f32 %v1282, %v1366
      %v1425 = vmul.f32 %v1283, %v1367
      %v1426 = vmul.f32 %v1284, %v1366
      %v1427 = vmul.f32 %v1285, %v1367
      %v1428 = vmul.f32 %v1286, %v1366
      %v1429 = vmul.f32 %v1287, %v1367
      %v1430 = vmul.f32 %v1288, %v1366
      %v1431 = vmul.f32 %v1289, %v1367
      %1433 = vset.pattern.permute.xlu0 0
      %1434 = vperm.xlu0 %1433, %v381
      %v1435 = vpop.permute.xlu0 %1434
      %v1438 = vsel %vm456, %v380, 0
      %1440 = vmatprep.subr.mxu0 0.0
      %1441 = vmatpush1.msra.mxu0 0.0
      %1442 = vmatprep.subr.mxu0 0.0
      %1443 = vmatpush1.msra.mxu0 0.0
      %1444 = vmatprep.subr.mxu0 0.0
      %1445 = vmatpush1.msra.mxu0 0.0
      %1446 = vmatprep.subr.mxu0 0.0
      %1447 = vmatpush1.msra.mxu0 0.0
      %1448 = vmatprep.subr.mxu0 0.0
      %1449 = vmatpush1.msra.mxu0 0.0
      %1450 = vmatprep.subr.mxu0 0.0
      %1451 = vmatpush1.msra.mxu0 0.0
      %1452 = vmatprep.subr.mxu0 0.0
      %1453 = vmatpush1.msra.mxu0 0.0
      %1454 = vmatprep.subr.mxu0 0.0
      %1455 = vmatpush1.msra.mxu0 0.0
      %1456 = vmatprep.subr.mxu0 0.0
      %1457 = vmatpush1.msra.mxu0 0.0
      %1458 = vmatprep.subr.mxu0 0.0
      %1459 = vmatpush1.msra.mxu0 0.0
      %1460 = vmatprep.subr.mxu0 0.0
      %1461 = vmatpush1.msra.mxu0 0.0
      %1462 = vmatprep.subr.mxu0 0.0
      %1463 = vmatpush1.msra.mxu0 0.0
      %1464 = vmatprep.subr.mxu0 0.0
      %1465 = vmatpush1.msra.mxu0 0.0
      %1466 = vmatprep.subr.mxu0 0.0
      %1467 = vmatpush1.msra.mxu0 0.0
      %1468 = vmatprep.subr.mxu0 0.0
      %1469 = vmatpush1.msra.mxu0 0.0
      %1470 = vmatprep.subr.mxu0 %v389
      %1471 = vmatpush1.msra.mxu0 %v388
      %1472 = vmatprep.subr.mxu0 0.0
      %1473 = vmatpush2.msra.mxu0 0.0
      %1474 = vmatprep.subr.mxu0 0.0
      %1475 = vmatpush2.msra.mxu0 0.0
      %1476 = vmatprep.subr.mxu0 0.0
      %1477 = vmatpush2.msra.mxu0 0.0
      %1478 = vmatprep.subr.mxu0 0.0
      %1479 = vmatpush2.msra.mxu0 0.0
      %1480 = vmatprep.subr.mxu0 0.0
      %1481 = vmatpush2.msra.mxu0 0.0
      %1482 = vmatprep.subr.mxu0 0.0
      %1483 = vmatpush2.msra.mxu0 0.0
      %1484 = vmatprep.subr.mxu0 0.0
      %1485 = vmatpush2.msra.mxu0 0.0
      %1486 = vmatprep.subr.mxu0 0.0
      %1487 = vmatpush2.msra.mxu0 0.0
      %1488 = vmatprep.subr.mxu0 0.0
      %1489 = vmatpush2.msra.mxu0 0.0
      %1490 = vmatprep.subr.mxu0 0.0
      %1491 = vmatpush2.msra.mxu0 0.0
      %1492 = vmatprep.subr.mxu0 0.0
      %1493 = vmatpush2.msra.mxu0 0.0
      %1494 = vmatprep.subr.mxu0 0.0
      %1495 = vmatpush2.msra.mxu0 0.0
      %1496 = vmatprep.subr.mxu0 0.0
      %1497 = vmatpush2.msra.mxu0 0.0
      %1498 = vmatprep.subr.mxu0 0.0
      %1499 = vmatpush2.msra.mxu0 0.0
      %1500 = vmatprep.subr.mxu0 0.0
      %1501 = vmatpush2.msra.mxu0 0.0
      %1502 = vmatprep.subr.mxu0 0.0
      %1503 = vmatpush2.msra.mxu0 0.0
      %1504 = vmatprep.mubr.f32.mxu0 0.0
      %1505 = vmatmul.mubr.f32.gmra.mxu0 %v1438
      %v1506 = vpop.f32.mrf.mxu0
      %v1507 = vadd.f32 %v1435, %v1506
      %v1508 = vpop.f32.mrf.mxu0
      %v1509 = vadd.f32 %v1435, %v1508
      %1510 = vdwg.mxu0
      %v1511 = vmax.f32 %v1507, 0.0
      %v1512 = vmax.f32 %v1509, 0.0
      %1514 = vset.pattern.permute.xlu0 0
      %1515 = vperm.xlu0 %1514, %v383
      %v1516 = vpop.permute.xlu0 %1515
      %v1519 = vsel %vm456, %v382, 0
      %1521 = vmatprep.subr.mxu0 0.0
      %1522 = vmatpush1.msra.mxu0 0.0
      %1523 = vmatprep.subr.mxu0 0.0
      %1524 = vmatpush1.msra.mxu0 0.0
      %1525 = vmatprep.subr.mxu0 0.0
      %1526 = vmatpush1.msra.mxu0 0.0
      %1527 = vmatprep.subr.mxu0 0.0
      %1528 = vmatpush1.msra.mxu0 0.0
      %1529 = vmatprep.subr.mxu0 0.0
      %1530 = vmatpush1.msra.mxu0 0.0
      %1531 = vmatprep.subr.mxu0 0.0
      %1532 = vmatpush1.msra.mxu0 0.0
      %1533 = vmatprep.subr.mxu0 0.0
      %1534 = vmatpush1.msra.mxu0 0.0
      %1535 = vmatprep.subr.mxu0 0.0
      %1536 = vmatpush1.msra.mxu0 0.0
      %1537 = vmatprep.subr.mxu0 0.0
      %1538 = vmatpush1.msra.mxu0 0.0
      %1539 = vmatprep.subr.mxu0 0.0
      %1540 = vmatpush1.msra.mxu0 0.0
      %1541 = vmatprep.subr.mxu0 0.0
      %1542 = vmatpush1.msra.mxu0 0.0
      %1543 = vmatprep.subr.mxu0 0.0
      %1544 = vmatpush1.msra.mxu0 0.0
      %1545 = vmatprep.subr.mxu0 0.0
      %1546 = vmatpush1.msra.mxu0 0.0
      %1547 = vmatprep.subr.mxu0 0.0
      %1548 = vmatpush1.msra.mxu0 0.0
      %1549 = vmatprep.subr.mxu0 0.0
      %1550 = vmatpush1.msra.mxu0 0.0
      %1551 = vmatprep.subr.mxu0 %v391
      %1552 = vmatpush1.msra.mxu0 %v390
      %1553 = vmatprep.subr.mxu0 0.0
      %1554 = vmatpush2.msra.mxu0 0.0
      %1555 = vmatprep.subr.mxu0 0.0
      %1556 = vmatpush2.msra.mxu0 0.0
      %1557 = vmatprep.subr.mxu0 0.0
      %1558 = vmatpush2.msra.mxu0 0.0
      %1559 = vmatprep.subr.mxu0 0.0
      %1560 = vmatpush2.msra.mxu0 0.0
      %1561 = vmatprep.subr.mxu0 0.0
      %1562 = vmatpush2.msra.mxu0 0.0
      %1563 = vmatprep.subr.mxu0 0.0
      %1564 = vmatpush2.msra.mxu0 0.0
      %1565 = vmatprep.subr.mxu0 0.0
      %1566 = vmatpush2.msra.mxu0 0.0
      %1567 = vmatprep.subr.mxu0 0.0
      %1568 = vmatpush2.msra.mxu0 0.0
      %1569 = vmatprep.subr.mxu0 0.0
      %1570 = vmatpush2.msra.mxu0 0.0
      %1571 = vmatprep.subr.mxu0 0.0
      %1572 = vmatpush2.msra.mxu0 0.0
      %1573 = vmatprep.subr.mxu0 0.0
      %1574 = vmatpush2.msra.mxu0 0.0
      %1575 = vmatprep.subr.mxu0 0.0
      %1576 = vmatpush2.msra.mxu0 0.0
      %1577 = vmatprep.subr.mxu0 0.0
      %1578 = vmatpush2.msra.mxu0 0.0
      %1579 = vmatprep.subr.mxu0 0.0
      %1580 = vmatpush2.msra.mxu0 0.0
      %1581 = vmatprep.subr.mxu0 0.0
      %1582 = vmatpush2.msra.mxu0 0.0
      %1583 = vmatprep.subr.mxu0 0.0
      %1584 = vmatpush2.msra.mxu0 0.0
      %1585 = vmatprep.mubr.f32.mxu0 0.0
      %1586 = vmatmul.mubr.f32.gmra.mxu0 %v1519
      %v1587 = vpop.f32.mrf.mxu0
      %v1588 = vadd.f32 %v1516, %v1587
      %v1589 = vpop.f32.mrf.mxu0
      %v1590 = vadd.f32 %v1516, %v1589
      %1591 = vdwg.mxu0
      %v1592 = vmax.f32 %v1588, 0.0
      %v1593 = vmax.f32 %v1590, 0.0
      %1594 = vmatprep.subr.mxu0 %v1399
      %1595 = vmatpush1.xpose.msra.mxu0 %v1398
      %1596 = vmatprep.subr.mxu0 %v1397
      %1597 = vmatpush1.xpose.msra.mxu0 %v1396
      %1598 = vmatprep.subr.mxu0 %v1395
      %1599 = vmatpush1.xpose.msra.mxu0 %v1394
      %1600 = vmatprep.subr.mxu0 %v1393
      %1601 = vmatpush1.xpose.msra.mxu0 %v1392
      %1602 = vmatprep.subr.mxu0 %v1391
      %1603 = vmatpush1.xpose.msra.mxu0 %v1390
      %1604 = vmatprep.subr.mxu0 %v1389
      %1605 = vmatpush1.xpose.msra.mxu0 %v1388
      %1606 = vmatprep.subr.mxu0 %v1387
      %1607 = vmatpush1.xpose.msra.mxu0 %v1386
      %1608 = vmatprep.subr.mxu0 %v1385
      %1609 = vmatpush1.xpose.msra.mxu0 %v1384
      %1610 = vmatprep.subr.mxu0 %v1383
      %1611 = vmatpush1.xpose.msra.mxu0 %v1382
      %1612 = vmatprep.subr.mxu0 %v1381
      %1613 = vmatpush1.xpose.msra.mxu0 %v1380
      %1614 = vmatprep.subr.mxu0 %v1379
      %1615 = vmatpush1.xpose.msra.mxu0 %v1378
      %1616 = vmatprep.subr.mxu0 %v1377
      %1617 = vmatpush1.xpose.msra.mxu0 %v1376
      %1618 = vmatprep.subr.mxu0 %v1375
      %1619 = vmatpush1.xpose.msra.mxu0 %v1374
      %1620 = vmatprep.subr.mxu0 %v1373
      %1621 = vmatpush1.xpose.msra.mxu0 %v1372
      %1622 = vmatprep.subr.mxu0 %v1371
      %1623 = vmatpush1.xpose.msra.mxu0 %v1370
      %1624 = vmatprep.subr.mxu0 %v1369
      %1625 = vmatpush1.xpose.msra.mxu0 %v1368
      %1626 = vmatprep.subr.mxu0 %v1431
      %1627 = vmatpush2.xpose.msra.mxu0 %v1430
      %1628 = vmatprep.subr.mxu0 %v1429
      %1629 = vmatpush2.xpose.msra.mxu0 %v1428
      %1630 = vmatprep.subr.mxu0 %v1427
      %1631 = vmatpush2.xpose.msra.mxu0 %v1426
      %1632 = vmatprep.subr.mxu0 %v1425
      %1633 = vmatpush2.xpose.msra.mxu0 %v1424
      %1634 = vmatprep.subr.mxu0 %v1423
      %1635 = vmatpush2.xpose.msra.mxu0 %v1422
      %1636 = vmatprep.subr.mxu0 %v1421
      %1637 = vmatpush2.xpose.msra.mxu0 %v1420
      %1638 = vmatprep.subr.mxu0 %v1419
      %1639 = vmatpush2.xpose.msra.mxu0 %v1418
      %1640 = vmatprep.subr.mxu0 %v1417
      %1641 = vmatpush2.xpose.msra.mxu0 %v1416
      %1642 = vmatprep.subr.mxu0 %v1415
      %1643 = vmatpush2.xpose.msra.mxu0 %v1414
      %1644 = vmatprep.subr.mxu0 %v1413
      %1645 = vmatpush2.xpose.msra.mxu0 %v1412
      %1646 = vmatprep.subr.mxu0 %v1411
      %1647 = vmatpush2.xpose.msra.mxu0 %v1410
      %1648 = vmatprep.subr.mxu0 %v1409
      %1649 = vmatpush2.xpose.msra.mxu0 %v1408
      %1650 = vmatprep.subr.mxu0 %v1407
      %1651 = vmatpush2.xpose.msra.mxu0 %v1406
      %1652 = vmatprep.subr.mxu0 %v1405
      %1653 = vmatpush2.xpose.msra.mxu0 %v1404
      %1654 = vmatprep.subr.mxu0 %v1403
      %1655 = vmatpush2.xpose.msra.mxu0 %v1402
      %1656 = vmatprep.subr.mxu0 %v1401
      %1657 = vmatpush2.xpose.msra.mxu0 %v1400
      %1658 = vmatprep.mubr.f32.mxu0 %v1593
      %1659 = vmatmul.mubr.f32.gmra.mxu0 %v1592
      %v1660 = vpop.f32.mrf.mxu0
      %v1661 = vadd.f32 %v1511, %v1660
      %v1662 = vpop.f32.mrf.mxu0
      %v1663 = vadd.f32 %v1512, %v1662
      %1664 = vdwg.mxu0
      %v1665 = vadd.f32 %v1661, %v388
      %v1666 = vadd.f32 %v1663, %v389
      %1667 = vxpose.xlu0.b32.start [1/16] %v1665, 128
      %1668 = vxpose.xlu0.b32.cont [2/16] 0.0, 128
      %1669 = vxpose.xlu0.b32.cont [3/16] 0.0, 128
      %1670 = vxpose.xlu0.b32.cont [4/16] 0.0, 128
      %1671 = vxpose.xlu0.b32.cont [5/16] 0.0, 128
      %1672 = vxpose.xlu0.b32.cont [6/16] 0.0, 128
      %1673 = vxpose.xlu0.b32.cont [7/16] 0.0, 128
      %1674 = vxpose.xlu0.b32.cont [8/16] 0.0, 128
      %1675 = vxpose.xlu0.b32.cont [9/16] 0.0, 128
      %1676 = vxpose.xlu0.b32.cont [10/16] 0.0, 128
      %1677 = vxpose.xlu0.b32.cont [11/16] 0.0, 128
      %1678 = vxpose.xlu0.b32.cont [12/16] 0.0, 128
      %1679 = vxpose.xlu0.b32.cont [13/16] 0.0, 128
      %1680 = vxpose.xlu0.b32.cont [14/16] 0.0, 128
      %1681 = vxpose.xlu0.b32.cont [15/16] 0.0, 128
      %1682 = vxpose.xlu0.b32.end [16/16] 0.0, 128
      %v1683 = vpop.trf.xlu0
      %v1684 = vpop.trf.xlu0
      %v1685 = vpop.trf.xlu0
      %v1686 = vpop.trf.xlu0
      %v1687 = vpop.trf.xlu0
      %v1688 = vpop.trf.xlu0
      %v1689 = vpop.trf.xlu0
      %v1690 = vpop.trf.xlu0
      %v1691 = vpop.trf.xlu0
      %v1692 = vpop.trf.xlu0
      %v1693 = vpop.trf.xlu0
      %v1694 = vpop.trf.xlu0
      %v1695 = vpop.trf.xlu0
      %v1696 = vpop.trf.xlu0
      %v1697 = vpop.trf.xlu0
      %v1698 = vpop.trf.xlu0
      %1699 = vxpose.xlu0.b32.start [1/16] %v1666, 128
      %1700 = vxpose.xlu0.b32.cont [2/16] 0.0, 128
      %1701 = vxpose.xlu0.b32.cont [3/16] 0.0, 128
      %1702 = vxpose.xlu0.b32.cont [4/16] 0.0, 128
      %1703 = vxpose.xlu0.b32.cont [5/16] 0.0, 128
      %1704 = vxpose.xlu0.b32.cont [6/16] 0.0, 128
      %1705 = vxpose.xlu0.b32.cont [7/16] 0.0, 128
      %1706 = vxpose.xlu0.b32.cont [8/16] 0.0, 128
      %1707 = vxpose.xlu0.b32.cont [9/16] 0.0, 128
      %1708 = vxpose.xlu0.b32.cont [10/16] 0.0, 128
      %1709 = vxpose.xlu0.b32.cont [11/16] 0.0, 128
      %1710 = vxpose.xlu0.b32.cont [12/16] 0.0, 128
      %1711 = vxpose.xlu0.b32.cont [13/16] 0.0, 128
      %1712 = vxpose.xlu0.b32.cont [14/16] 0.0, 128
      %1713 = vxpose.xlu0.b32.cont [15/16] 0.0, 128
      %1714 = vxpose.xlu0.b32.end [16/16] 0.0, 128
      %v1715 = vpop.trf.xlu0
      %v1716 = vpop.trf.xlu0
      %v1717 = vpop.trf.xlu0
      %v1718 = vpop.trf.xlu0
      %v1719 = vpop.trf.xlu0
      %v1720 = vpop.trf.xlu0
      %v1721 = vpop.trf.xlu0
      %v1722 = vpop.trf.xlu0
      %v1723 = vpop.trf.xlu0
      %v1724 = vpop.trf.xlu0
      %v1725 = vpop.trf.xlu0
      %v1726 = vpop.trf.xlu0
      %v1727 = vpop.trf.xlu0
      %v1728 = vpop.trf.xlu0
      %v1729 = vpop.trf.xlu0
      %v1730 = vpop.trf.xlu0
      %v1732 = vsel %vm456, %v1683, 0
      %v1735 = vsel %vm456, %v1684, 0
      %v1738 = vsel %vm456, %v1685, 0
      %v1741 = vsel %vm456, %v1686, 0
      %v1744 = vsel %vm456, %v1687, 0
      %v1747 = vsel %vm456, %v1688, 0
      %v1750 = vsel %vm456, %v1689, 0
      %v1753 = vsel %vm456, %v1690, 0
      %v1756 = vsel %vm456, %v1691, 0
      %v1759 = vsel %vm456, %v1692, 0
      %v1762 = vsel %vm456, %v1693, 0
      %v1765 = vsel %vm456, %v1694, 0
      %v1768 = vsel %vm456, %v1695, 0
      %v1771 = vsel %vm456, %v1696, 0
      %v1774 = vsel %vm456, %v1697, 0
      %v1777 = vsel %vm456, %v1698, 0
      %v1780 = vsel %vm456, %v1715, 0
      %v1783 = vsel %vm456, %v1716, 0
      %v1786 = vsel %vm456, %v1717, 0
      %v1789 = vsel %vm456, %v1718, 0
      %v1792 = vsel %vm456, %v1719, 0
      %v1795 = vsel %vm456, %v1720, 0
      %v1798 = vsel %vm456, %v1721, 0
      %v1801 = vsel %vm456, %v1722, 0
      %v1804 = vsel %vm456, %v1723, 0
      %v1807 = vsel %vm456, %v1724, 0
      %v1810 = vsel %vm456, %v1725, 0
      %v1813 = vsel %vm456, %v1726, 0
      %v1816 = vsel %vm456, %v1727, 0
      %v1819 = vsel %vm456, %v1728, 0
      %v1822 = vsel %vm456, %v1729, 0
      %v1825 = vsel %vm456, %v1730, 0
      %1827 = vmatprep.subr.mxu0 0.0
      %1828 = vmatpush1.msra.mxu0 0.0
      %1829 = vmatprep.subr.mxu0 0.0
      %1830 = vmatpush1.msra.mxu0 0.0
      %1831 = vmatprep.subr.mxu0 0.0
      %1832 = vmatpush1.msra.mxu0 0.0
      %1833 = vmatprep.subr.mxu0 0.0
      %1834 = vmatpush1.msra.mxu0 0.0
      %1835 = vmatprep.subr.mxu0 0.0
      %1836 = vmatpush1.msra.mxu0 0.0
      %1837 = vmatprep.subr.mxu0 0.0
      %1838 = vmatpush1.msra.mxu0 0.0
      %1839 = vmatprep.subr.mxu0 0.0
      %1840 = vmatpush1.msra.mxu0 0.0
      %1841 = vmatprep.subr.mxu0 0.0
      %1842 = vmatpush1.msra.mxu0 0.0
      %1843 = vmatprep.subr.mxu0 0.0
      %1844 = vmatpush1.msra.mxu0 0.0
      %1845 = vmatprep.subr.mxu0 0.0
      %1846 = vmatpush1.msra.mxu0 0.0
      %1847 = vmatprep.subr.mxu0 0.0
      %1848 = vmatpush1.msra.mxu0 0.0
      %1849 = vmatprep.subr.mxu0 0.0
      %1850 = vmatpush1.msra.mxu0 0.0
      %1851 = vmatprep.subr.mxu0 0.0
      %1852 = vmatpush1.msra.mxu0 0.0
      %1853 = vmatprep.subr.mxu0 0.0
      %1854 = vmatpush1.msra.mxu0 0.0
      %1855 = vmatprep.subr.mxu0 0.0
      %1856 = vmatpush1.msra.mxu0 0.0
      %1857 = vmatprep.subr.mxu0 %v1666
      %1858 = vmatpush1.msra.mxu0 %v1665
      %1859 = vmatprep.subr.mxu0 0.0
      %1860 = vmatpush2.msra.mxu0 0.0
      %1861 = vmatprep.subr.mxu0 0.0
      %1862 = vmatpush2.msra.mxu0 0.0
      %1863 = vmatprep.subr.mxu0 0.0
      %1864 = vmatpush2.msra.mxu0 0.0
      %1865 = vmatprep.subr.mxu0 0.0
      %1866 = vmatpush2.msra.mxu0 0.0
      %1867 = vmatprep.subr.mxu0 0.0
      %1868 = vmatpush2.msra.mxu0 0.0
      %1869 = vmatprep.subr.mxu0 0.0
      %1870 = vmatpush2.msra.mxu0 0.0
      %1871 = vmatprep.subr.mxu0 0.0
      %1872 = vmatpush2.msra.mxu0 0.0
      %1873 = vmatprep.subr.mxu0 0.0
      %1874 = vmatpush2.msra.mxu0 0.0
      %1875 = vmatprep.subr.mxu0 0.0
      %1876 = vmatpush2.msra.mxu0 0.0
      %1877 = vmatprep.subr.mxu0 0.0
      %1878 = vmatpush2.msra.mxu0 0.0
      %1879 = vmatprep.subr.mxu0 0.0
      %1880 = vmatpush2.msra.mxu0 0.0
      %1881 = vmatprep.subr.mxu0 0.0
      %1882 = vmatpush2.msra.mxu0 0.0
      %1883 = vmatprep.subr.mxu0 0.0
      %1884 = vmatpush2.msra.mxu0 0.0
      %1885 = vmatprep.subr.mxu0 0.0
      %1886 = vmatpush2.msra.mxu0 0.0
      %1887 = vmatprep.subr.mxu0 0.0
      %1888 = vmatpush2.msra.mxu0 0.0
      %1889 = vmatprep.subr.mxu0 0.0
      %1890 = vmatpush2.msra.mxu0 0.0
      %1891 = vmatprep.mubr.f32.mxu0 0.0
      %1892 = vmatmul.mubr.f32.gmra.mxu0 %v1732
      %v1893 = vpop.f32.mrf.mxu0
      %v1894 = vadd.f32 0.0, %v1893
      %v1895 = vpop.f32.mrf.mxu0
      %v1896 = vadd.f32 0.0, %v1895
      %1897 = vmatprep.mubr.f32.mxu0 0.0
      %1898 = vmatmul.mubr.f32.gmra.mxu0 %v1735
      %v1899 = vpop.f32.mrf.mxu0
      %v1900 = vadd.f32 0.0, %v1899
      %v1901 = vpop.f32.mrf.mxu0
      %v1902 = vadd.f32 0.0, %v1901
      %1903 = vmatprep.mubr.f32.mxu0 0.0
      %1904 = vmatmul.mubr.f32.gmra.mxu0 %v1738
      %v1905 = vpop.f32.mrf.mxu0
      %v1906 = vadd.f32 0.0, %v1905
      %v1907 = vpop.f32.mrf.mxu0
      %v1908 = vadd.f32 0.0, %v1907
      %1909 = vmatprep.mubr.f32.mxu0 0.0
      %1910 = vmatmul.mubr.f32.gmra.mxu0 %v1741
      %v1911 = vpop.f32.mrf.mxu0
      %v1912 = vadd.f32 0.0, %v1911
      %v1913 = vpop.f32.mrf.mxu0
      %v1914 = vadd.f32 0.0, %v1913
      %1915 = vmatprep.mubr.f32.mxu0 0.0
      %1916 = vmatmul.mubr.f32.gmra.mxu0 %v1744
      %v1917 = vpop.f32.mrf.mxu0
      %v1918 = vadd.f32 0.0, %v1917
      %v1919 = vpop.f32.mrf.mxu0
      %v1920 = vadd.f32 0.0, %v1919
      %1921 = vmatprep.mubr.f32.mxu0 0.0
      %1922 = vmatmul.mubr.f32.gmra.mxu0 %v1747
      %v1923 = vpop.f32.mrf.mxu0
      %v1924 = vadd.f32 0.0, %v1923
      %v1925 = vpop.f32.mrf.mxu0
      %v1926 = vadd.f32 0.0, %v1925
      %1927 = vmatprep.mubr.f32.mxu0 0.0
      %1928 = vmatmul.mubr.f32.gmra.mxu0 %v1750
      %v1929 = vpop.f32.mrf.mxu0
      %v1930 = vadd.f32 0.0, %v1929
      %v1931 = vpop.f32.mrf.mxu0
      %v1932 = vadd.f32 0.0, %v1931
      %1933 = vmatprep.mubr.f32.mxu0 0.0
      %1934 = vmatmul.mubr.f32.gmra.mxu0 %v1753
      %v1935 = vpop.f32.mrf.mxu0
      %v1936 = vadd.f32 0.0, %v1935
      %v1937 = vpop.f32.mrf.mxu0
      %v1938 = vadd.f32 0.0, %v1937
      %1939 = vmatprep.mubr.f32.mxu0 0.0
      %1940 = vmatmul.mubr.f32.gmra.mxu0 %v1756
      %v1941 = vpop.f32.mrf.mxu0
      %v1942 = vadd.f32 0.0, %v1941
      %v1943 = vpop.f32.mrf.mxu0
      %v1944 = vadd.f32 0.0, %v1943
      %1945 = vmatprep.mubr.f32.mxu0 0.0
      %1946 = vmatmul.mubr.f32.gmra.mxu0 %v1759
      %v1947 = vpop.f32.mrf.mxu0
      %v1948 = vadd.f32 0.0, %v1947
      %v1949 = vpop.f32.mrf.mxu0
      %v1950 = vadd.f32 0.0, %v1949
      %1951 = vmatprep.mubr.f32.mxu0 0.0
      %1952 = vmatmul.mubr.f32.gmra.mxu0 %v1762
      %v1953 = vpop.f32.mrf.mxu0
      %v1954 = vadd.f32 0.0, %v1953
      %v1955 = vpop.f32.mrf.mxu0
      %v1956 = vadd.f32 0.0, %v1955
      %1957 = vmatprep.mubr.f32.mxu0 0.0
      %1958 = vmatmul.mubr.f32.gmra.mxu0 %v1765
      %v1959 = vpop.f32.mrf.mxu0
      %v1960 = vadd.f32 0.0, %v1959
      %v1961 = vpop.f32.mrf.mxu0
      %v1962 = vadd.f32 0.0, %v1961
      %1963 = vmatprep.mubr.f32.mxu0 0.0
      %1964 = vmatmul.mubr.f32.gmra.mxu0 %v1768
      %v1965 = vpop.f32.mrf.mxu0
      %v1966 = vadd.f32 0.0, %v1965
      %v1967 = vpop.f32.mrf.mxu0
      %v1968 = vadd.f32 0.0, %v1967
      %1969 = vmatprep.mubr.f32.mxu0 0.0
      %1970 = vmatmul.mubr.f32.gmra.mxu0 %v1771
      %v1971 = vpop.f32.mrf.mxu0
      %v1972 = vadd.f32 0.0, %v1971
      %v1973 = vpop.f32.mrf.mxu0
      %v1974 = vadd.f32 0.0, %v1973
      %1975 = vmatprep.mubr.f32.mxu0 0.0
      %1976 = vmatmul.mubr.f32.gmra.mxu0 %v1774
      %v1977 = vpop.f32.mrf.mxu0
      %v1978 = vadd.f32 0.0, %v1977
      %v1979 = vpop.f32.mrf.mxu0
      %v1980 = vadd.f32 0.0, %v1979
      %1981 = vmatprep.mubr.f32.mxu0 0.0
      %1982 = vmatmul.mubr.f32.gmra.mxu0 %v1777
      %v1983 = vpop.f32.mrf.mxu0
      %v1984 = vadd.f32 0.0, %v1983
      %v1985 = vpop.f32.mrf.mxu0
      %v1986 = vadd.f32 0.0, %v1985
      %1987 = vmatprep.mubr.f32.mxu0 0.0
      %1988 = vmatmul.mubr.f32.gmra.mxu0 %v1780
      %v1989 = vpop.f32.mrf.mxu0
      %v1990 = vadd.f32 0.0, %v1989
      %v1991 = vpop.f32.mrf.mxu0
      %v1992 = vadd.f32 0.0, %v1991
      %1993 = vmatprep.mubr.f32.mxu0 0.0
      %1994 = vmatmul.mubr.f32.gmra.mxu0 %v1783
      %v1995 = vpop.f32.mrf.mxu0
      %v1996 = vadd.f32 0.0, %v1995
      %v1997 = vpop.f32.mrf.mxu0
      %v1998 = vadd.f32 0.0, %v1997
      %1999 = vmatprep.mubr.f32.mxu0 0.0
      %2000 = vmatmul.mubr.f32.gmra.mxu0 %v1786
      %v2001 = vpop.f32.mrf.mxu0
      %v2002 = vadd.f32 0.0, %v2001
      %v2003 = vpop.f32.mrf.mxu0
      %v2004 = vadd.f32 0.0, %v2003
      %2005 = vmatprep.mubr.f32.mxu0 0.0
      %2006 = vmatmul.mubr.f32.gmra.mxu0 %v1789
      %v2007 = vpop.f32.mrf.mxu0
      %v2008 = vadd.f32 0.0, %v2007
      %v2009 = vpop.f32.mrf.mxu0
      %v2010 = vadd.f32 0.0, %v2009
      %2011 = vmatprep.mubr.f32.mxu0 0.0
      %2012 = vmatmul.mubr.f32.gmra.mxu0 %v1792
      %v2013 = vpop.f32.mrf.mxu0
      %v2014 = vadd.f32 0.0, %v2013
      %v2015 = vpop.f32.mrf.mxu0
      %v2016 = vadd.f32 0.0, %v2015
      %2017 = vmatprep.mubr.f32.mxu0 0.0
      %2018 = vmatmul.mubr.f32.gmra.mxu0 %v1795
      %v2019 = vpop.f32.mrf.mxu0
      %v2020 = vadd.f32 0.0, %v2019
      %v2021 = vpop.f32.mrf.mxu0
      %v2022 = vadd.f32 0.0, %v2021
      %2023 = vmatprep.mubr.f32.mxu0 0.0
      %2024 = vmatmul.mubr.f32.gmra.mxu0 %v1798
      %v2025 = vpop.f32.mrf.mxu0
      %v2026 = vadd.f32 0.0, %v2025
      %v2027 = vpop.f32.mrf.mxu0
      %v2028 = vadd.f32 0.0, %v2027
      %2029 = vmatprep.mubr.f32.mxu0 0.0
      %2030 = vmatmul.mubr.f32.gmra.mxu0 %v1801
      %v2031 = vpop.f32.mrf.mxu0
      %v2032 = vadd.f32 0.0, %v2031
      %v2033 = vpop.f32.mrf.mxu0
      %v2034 = vadd.f32 0.0, %v2033
      %2035 = vmatprep.mubr.f32.mxu0 0.0
      %2036 = vmatmul.mubr.f32.gmra.mxu0 %v1804
      %v2037 = vpop.f32.mrf.mxu0
      %v2038 = vadd.f32 0.0, %v2037
      %v2039 = vpop.f32.mrf.mxu0
      %v2040 = vadd.f32 0.0, %v2039
      %2041 = vmatprep.mubr.f32.mxu0 0.0
      %2042 = vmatmul.mubr.f32.gmra.mxu0 %v1807
      %v2043 = vpop.f32.mrf.mxu0
      %v2044 = vadd.f32 0.0, %v2043
      %v2045 = vpop.f32.mrf.mxu0
      %v2046 = vadd.f32 0.0, %v2045
      %2047 = vmatprep.mubr.f32.mxu0 0.0
      %2048 = vmatmul.mubr.f32.gmra.mxu0 %v1810
      %v2049 = vpop.f32.mrf.mxu0
      %v2050 = vadd.f32 0.0, %v2049
      %v2051 = vpop.f32.mrf.mxu0
      %v2052 = vadd.f32 0.0, %v2051
      %2053 = vmatprep.mubr.f32.mxu0 0.0
      %2054 = vmatmul.mubr.f32.gmra.mxu0 %v1813
      %v2055 = vpop.f32.mrf.mxu0
      %v2056 = vadd.f32 0.0, %v2055
      %v2057 = vpop.f32.mrf.mxu0
      %v2058 = vadd.f32 0.0, %v2057
      %2059 = vmatprep.mubr.f32.mxu0 0.0
      %2060 = vmatmul.mubr.f32.gmra.mxu0 %v1816
      %v2061 = vpop.f32.mrf.mxu0
      %v2062 = vadd.f32 0.0, %v2061
      %v2063 = vpop.f32.mrf.mxu0
      %v2064 = vadd.f32 0.0, %v2063
      %2065 = vmatprep.mubr.f32.mxu0 0.0
      %2066 = vmatmul.mubr.f32.gmra.mxu0 %v1819
      %v2067 = vpop.f32.mrf.mxu0
      %v2068 = vadd.f32 0.0, %v2067
      %v2069 = vpop.f32.mrf.mxu0
      %v2070 = vadd.f32 0.0, %v2069
      %2071 = vmatprep.mubr.f32.mxu0 0.0
      %2072 = vmatmul.mubr.f32.gmra.mxu0 %v1822
      %v2073 = vpop.f32.mrf.mxu0
      %v2074 = vadd.f32 0.0, %v2073
      %v2075 = vpop.f32.mrf.mxu0
      %v2076 = vadd.f32 0.0, %v2075
      %2077 = vmatprep.mubr.f32.mxu0 0.0
      %2078 = vmatmul.mubr.f32.gmra.mxu0 %v1825
      %v2079 = vpop.f32.mrf.mxu0
      %v2080 = vadd.f32 0.0, %v2079
      %v2081 = vpop.f32.mrf.mxu0
      %v2082 = vadd.f32 0.0, %v2081
      %2083 = vdwg.mxu0
      %v2084 = vmax.f32 %v1894, %v1896
      %2085 = vmax.xlane.f32.xlu0 %v2084
      %v2086 = vpop.xlane.xlu0 %2085
      %v2087 = vmax.f32 %v1900, %v1902
      %2088 = vmax.xlane.f32.xlu0 %v2087
      %v2089 = vpop.xlane.xlu0 %2088
      %v2090 = vmax.f32 %v1906, %v1908
      %2091 = vmax.xlane.f32.xlu0 %v2090
      %v2092 = vpop.xlane.xlu0 %2091
      %v2093 = vmax.f32 %v1912, %v1914
      %2094 = vmax.xlane.f32.xlu0 %v2093
      %v2095 = vpop.xlane.xlu0 %2094
      %v2096 = vmax.f32 %v1918, %v1920
      %2097 = vmax.xlane.f32.xlu0 %v2096
      %v2098 = vpop.xlane.xlu0 %2097
      %v2099 = vmax.f32 %v1924, %v1926
      %2100 = vmax.xlane.f32.xlu0 %v2099
      %v2101 = vpop.xlane.xlu0 %2100
      %v2102 = vmax.f32 %v1930, %v1932
      %2103 = vmax.xlane.f32.xlu0 %v2102
      %v2104 = vpop.xlane.xlu0 %2103
      %v2105 = vmax.f32 %v1936, %v1938
      %2106 = vmax.xlane.f32.xlu0 %v2105
      %v2107 = vpop.xlane.xlu0 %2106
      %v2108 = vmax.f32 %v1942, %v1944
      %2109 = vmax.xlane.f32.xlu0 %v2108
      %v2110 = vpop.xlane.xlu0 %2109
      %v2111 = vmax.f32 %v1948, %v1950
      %2112 = vmax.xlane.f32.xlu0 %v2111
      %v2113 = vpop.xlane.xlu0 %2112
      %v2114 = vmax.f32 %v1954, %v1956
      %2115 = vmax.xlane.f32.xlu0 %v2114
      %v2116 = vpop.xlane.xlu0 %2115
      %v2117 = vmax.f32 %v1960, %v1962
      %2118 = vmax.xlane.f32.xlu0 %v2117
      %v2119 = vpop.xlane.xlu0 %2118
      %v2120 = vmax.f32 %v1966, %v1968
      %2121 = vmax.xlane.f32.xlu0 %v2120
      %v2122 = vpop.xlane.xlu0 %2121
      %v2123 = vmax.f32 %v1972, %v1974
      %2124 = vmax.xlane.f32.xlu0 %v2123
      %v2125 = vpop.xlane.xlu0 %2124
      %v2126 = vmax.f32 %v1978, %v1980
      %2127 = vmax.xlane.f32.xlu0 %v2126
      %v2128 = vpop.xlane.xlu0 %2127
      %v2129 = vmax.f32 %v1984, %v1986
      %2130 = vmax.xlane.f32.xlu0 %v2129
      %v2131 = vpop.xlane.xlu0 %2130
      %v2132 = vmax.f32 %v1990, %v1992
      %2133 = vmax.xlane.f32.xlu0 %v2132
      %v2134 = vpop.xlane.xlu0 %2133
      %v2135 = vmax.f32 %v1996, %v1998
      %2136 = vmax.xlane.f32.xlu0 %v2135
      %v2137 = vpop.xlane.xlu0 %2136
      %v2138 = vmax.f32 %v2002, %v2004
      %2139 = vmax.xlane.f32.xlu0 %v2138
      %v2140 = vpop.xlane.xlu0 %2139
      %v2141 = vmax.f32 %v2008, %v2010
      %2142 = vmax.xlane.f32.xlu0 %v2141
      %v2143 = vpop.xlane.xlu0 %2142
      %v2144 = vmax.f32 %v2014, %v2016
      %2145 = vmax.xlane.f32.xlu0 %v2144
      %v2146 = vpop.xlane.xlu0 %2145
      %v2147 = vmax.f32 %v2020, %v2022
      %2148 = vmax.xlane.f32.xlu0 %v2147
      %v2149 = vpop.xlane.xlu0 %2148
      %v2150 = vmax.f32 %v2026, %v2028
      %2151 = vmax.xlane.f32.xlu0 %v2150
      %v2152 = vpop.xlane.xlu0 %2151
      %v2153 = vmax.f32 %v2032, %v2034
      %2154 = vmax.xlane.f32.xlu0 %v2153
      %v2155 = vpop.xlane.xlu0 %2154
      %v2156 = vmax.f32 %v2038, %v2040
      %2157 = vmax.xlane.f32.xlu0 %v2156
      %v2158 = vpop.xlane.xlu0 %2157
      %v2159 = vmax.f32 %v2044, %v2046
      %2160 = vmax.xlane.f32.xlu0 %v2159
      %v2161 = vpop.xlane.xlu0 %2160
      %v2162 = vmax.f32 %v2050, %v2052
      %2163 = vmax.xlane.f32.xlu0 %v2162
      %v2164 = vpop.xlane.xlu0 %2163
      %v2165 = vmax.f32 %v2056, %v2058
      %2166 = vmax.xlane.f32.xlu0 %v2165
      %v2167 = vpop.xlane.xlu0 %2166
      %v2168 = vmax.f32 %v2062, %v2064
      %2169 = vmax.xlane.f32.xlu0 %v2168
      %v2170 = vpop.xlane.xlu0 %2169
      %v2171 = vmax.f32 %v2068, %v2070
      %2172 = vmax.xlane.f32.xlu0 %v2171
      %v2173 = vpop.xlane.xlu0 %2172
      %v2174 = vmax.f32 %v2074, %v2076
      %2175 = vmax.xlane.f32.xlu0 %v2174
      %v2176 = vpop.xlane.xlu0 %2175
      %v2177 = vmax.f32 %v2080, %v2082
      %2178 = vmax.xlane.f32.xlu0 %v2177
      %v2179 = vpop.xlane.xlu0 %2178
      %v2180 = vsub.f32 %v1894, %v2086
      %v2181 = vsub.f32 %v1896, %v2086
      %v2182 = vsub.f32 %v1900, %v2089
      %v2183 = vsub.f32 %v1902, %v2089
      %v2184 = vsub.f32 %v1906, %v2092
      %v2185 = vsub.f32 %v1908, %v2092
      %v2186 = vsub.f32 %v1912, %v2095
      %v2187 = vsub.f32 %v1914, %v2095
      %v2188 = vsub.f32 %v1918, %v2098
      %v2189 = vsub.f32 %v1920, %v2098
      %v2190 = vsub.f32 %v1924, %v2101
      %v2191 = vsub.f32 %v1926, %v2101
      %v2192 = vsub.f32 %v1930, %v2104
      %v2193 = vsub.f32 %v1932, %v2104
      %v2194 = vsub.f32 %v1936, %v2107
      %v2195 = vsub.f32 %v1938, %v2107
      %v2196 = vsub.f32 %v1942, %v2110
      %v2197 = vsub.f32 %v1944, %v2110
      %v2198 = vsub.f32 %v1948, %v2113
      %v2199 = vsub.f32 %v1950, %v2113
      %v2200 = vsub.f32 %v1954, %v2116
      %v2201 = vsub.f32 %v1956, %v2116
      %v2202 = vsub.f32 %v1960, %v2119
      %v2203 = vsub.f32 %v1962, %v2119
      %v2204 = vsub.f32 %v1966, %v2122
      %v2205 = vsub.f32 %v1968, %v2122
      %v2206 = vsub.f32 %v1972, %v2125
      %v2207 = vsub.f32 %v1974, %v2125
      %v2208 = vsub.f32 %v1978, %v2128
      %v2209 = vsub.f32 %v1980, %v2128
      %v2210 = vsub.f32 %v1984, %v2131
      %v2211 = vsub.f32 %v1986, %v2131
      %v2212 = vsub.f32 %v1990, %v2134
      %v2213 = vsub.f32 %v1992, %v2134
      %v2214 = vsub.f32 %v1996, %v2137
      %v2215 = vsub.f32 %v1998, %v2137
      %v2216 = vsub.f32 %v2002, %v2140
      %v2217 = vsub.f32 %v2004, %v2140
      %v2218 = vsub.f32 %v2008, %v2143
      %v2219 = vsub.f32 %v2010, %v2143
      %v2220 = vsub.f32 %v2014, %v2146
      %v2221 = vsub.f32 %v2016, %v2146
      %v2222 = vsub.f32 %v2020, %v2149
      %v2223 = vsub.f32 %v2022, %v2149
      %v2224 = vsub.f32 %v2026, %v2152
      %v2225 = vsub.f32 %v2028, %v2152
      %v2226 = vsub.f32 %v2032, %v2155
      %v2227 = vsub.f32 %v2034, %v2155
      %v2228 = vsub.f32 %v2038, %v2158
      %v2229 = vsub.f32 %v2040, %v2158
      %v2230 = vsub.f32 %v2044, %v2161
      %v2231 = vsub.f32 %v2046, %v2161
      %v2232 = vsub.f32 %v2050, %v2164
      %v2233 = vsub.f32 %v2052, %v2164
      %v2234 = vsub.f32 %v2056, %v2167
      %v2235 = vsub.f32 %v2058, %v2167
      %v2236 = vsub.f32 %v2062, %v2170
      %v2237 = vsub.f32 %v2064, %v2170
      %v2238 = vsub.f32 %v2068, %v2173
      %v2239 = vsub.f32 %v2070, %v2173
      %v2240 = vsub.f32 %v2074, %v2176
      %v2241 = vsub.f32 %v2076, %v2176
      %v2242 = vsub.f32 %v2080, %v2179
      %v2243 = vsub.f32 %v2082, %v2179
      %v2244 = vmul.f32 %v2180, 1.442695
      %v2245 = vpow.pop %v2244
      %v2246 = vmul.f32 %v2181, 1.442695
      %v2247 = vpow.pop %v2246
      %v2248 = vmul.f32 %v2182, 1.442695
      %v2249 = vpow.pop %v2248
      %v2250 = vmul.f32 %v2183, 1.442695
      %v2251 = vpow.pop %v2250
      %v2252 = vmul.f32 %v2184, 1.442695
      %v2253 = vpow.pop %v2252
      %v2254 = vmul.f32 %v2185, 1.442695
      %v2255 = vpow.pop %v2254
      %v2256 = vmul.f32 %v2186, 1.442695
      %v2257 = vpow.pop %v2256
      %v2258 = vmul.f32 %v2187, 1.442695
      %v2259 = vpow.pop %v2258
      %v2260 = vmul.f32 %v2188, 1.442695
      %v2261 = vpow.pop %v2260
      %v2262 = vmul.f32 %v2189, 1.442695
      %v2263 = vpow.pop %v2262
      %v2264 = vmul.f32 %v2190, 1.442695
      %v2265 = vpow.pop %v2264
      %v2266 = vmul.f32 %v2191, 1.442695
      %v2267 = vpow.pop %v2266
      %v2268 = vmul.f32 %v2192, 1.442695
      %v2269 = vpow.pop %v2268
      %v2270 = vmul.f32 %v2193, 1.442695
      %v2271 = vpow.pop %v2270
      %v2272 = vmul.f32 %v2194, 1.442695
      %v2273 = vpow.pop %v2272
      %v2274 = vmul.f32 %v2195, 1.442695
      %v2275 = vpow.pop %v2274
      %v2276 = vmul.f32 %v2196, 1.442695
      %v2277 = vpow.pop %v2276
      %v2278 = vmul.f32 %v2197, 1.442695
      %v2279 = vpow.pop %v2278
      %v2280 = vmul.f32 %v2198, 1.442695
      %v2281 = vpow.pop %v2280
      %v2282 = vmul.f32 %v2199, 1.442695
      %v2283 = vpow.pop %v2282
      %v2284 = vmul.f32 %v2200, 1.442695
      %v2285 = vpow.pop %v2284
      %v2286 = vmul.f32 %v2201, 1.442695
      %v2287 = vpow.pop %v2286
      %v2288 = vmul.f32 %v2202, 1.442695
      %v2289 = vpow.pop %v2288
      %v2290 = vmul.f32 %v2203, 1.442695
      %v2291 = vpow.pop %v2290
      %v2292 = vmul.f32 %v2204, 1.442695
      %v2293 = vpow.pop %v2292
      %v2294 = vmul.f32 %v2205, 1.442695
      %v2295 = vpow.pop %v2294
      %v2296 = vmul.f32 %v2206, 1.442695
      %v2297 = vpow.pop %v2296
      %v2298 = vmul.f32 %v2207, 1.442695
      %v2299 = vpow.pop %v2298
      %v2300 = vmul.f32 %v2208, 1.442695
      %v2301 = vpow.pop %v2300
      %v2302 = vmul.f32 %v2209, 1.442695
      %v2303 = vpow.pop %v2302
      %v2304 = vmul.f32 %v2210, 1.442695
      %v2305 = vpow.pop %v2304
      %v2306 = vmul.f32 %v2211, 1.442695
      %v2307 = vpow.pop %v2306
      %v2308 = vmul.f32 %v2212, 1.442695
      %v2309 = vpow.pop %v2308
      %v2310 = vmul.f32 %v2213, 1.442695
      %v2311 = vpow.pop %v2310
      %v2312 = vmul.f32 %v2214, 1.442695
      %v2313 = vpow.pop %v2312
      %v2314 = vmul.f32 %v2215, 1.442695
      %v2315 = vpow.pop %v2314
      %v2316 = vmul.f32 %v2216, 1.442695
      %v2317 = vpow.pop %v2316
      %v2318 = vmul.f32 %v2217, 1.442695
      %v2319 = vpow.pop %v2318
      %v2320 = vmul.f32 %v2218, 1.442695
      %v2321 = vpow.pop %v2320
      %v2322 = vmul.f32 %v2219, 1.442695
      %v2323 = vpow.pop %v2322
      %v2324 = vmul.f32 %v2220, 1.442695
      %v2325 = vpow.pop %v2324
      %v2326 = vmul.f32 %v2221, 1.442695
      %v2327 = vpow.pop %v2326
      %v2328 = vmul.f32 %v2222, 1.442695
      %v2329 = vpow.pop %v2328
      %v2330 = vmul.f32 %v2223, 1.442695
      %v2331 = vpow.pop %v2330
      %v2332 = vmul.f32 %v2224, 1.442695
      %v2333 = vpow.pop %v2332
      %v2334 = vmul.f32 %v2225, 1.442695
      %v2335 = vpow.pop %v2334
      %v2336 = vmul.f32 %v2226, 1.442695
      %v2337 = vpow.pop %v2336
      %v2338 = vmul.f32 %v2227, 1.442695
      %v2339 = vpow.pop %v2338
      %v2340 = vmul.f32 %v2228, 1.442695
      %v2341 = vpow.pop %v2340
      %v2342 = vmul.f32 %v2229, 1.442695
      %v2343 = vpow.pop %v2342
      %v2344 = vmul.f32 %v2230, 1.442695
      %v2345 = vpow.pop %v2344
      %v2346 = vmul.f32 %v2231, 1.442695
      %v2347 = vpow.pop %v2346
      %v2348 = vmul.f32 %v2232, 1.442695
      %v2349 = vpow.pop %v2348
      %v2350 = vmul.f32 %v2233, 1.442695
      %v2351 = vpow.pop %v2350
      %v2352 = vmul.f32 %v2234, 1.442695
      %v2353 = vpow.pop %v2352
      %v2354 = vmul.f32 %v2235, 1.442695
      %v2355 = vpow.pop %v2354
      %v2356 = vmul.f32 %v2236, 1.442695
      %v2357 = vpow.pop %v2356
      %v2358 = vmul.f32 %v2237, 1.442695
      %v2359 = vpow.pop %v2358
      %v2360 = vmul.f32 %v2238, 1.442695
      %v2361 = vpow.pop %v2360
      %v2362 = vmul.f32 %v2239, 1.442695
      %v2363 = vpow.pop %v2362
      %v2364 = vmul.f32 %v2240, 1.442695
      %v2365 = vpow.pop %v2364
      %v2366 = vmul.f32 %v2241, 1.442695
      %v2367 = vpow.pop %v2366
      %v2368 = vmul.f32 %v2242, 1.442695
      %v2369 = vpow.pop %v2368
      %v2370 = vmul.f32 %v2243, 1.442695
      %v2371 = vpow.pop %v2370
      %v2372 = vadd.f32 %v2245, %v2247
      %2373 = vadd.xlane.f32.xlu0 %v2372
      %v2374 = vpop.xlane.xlu0 %2373
      %v2375 = vadd.f32 %v2249, %v2251
      %2376 = vadd.xlane.f32.xlu0 %v2375
      %v2377 = vpop.xlane.xlu0 %2376
      %v2378 = vadd.f32 %v2253, %v2255
      %2379 = vadd.xlane.f32.xlu0 %v2378
      %v2380 = vpop.xlane.xlu0 %2379
      %v2381 = vadd.f32 %v2257, %v2259
      %2382 = vadd.xlane.f32.xlu0 %v2381
      %v2383 = vpop.xlane.xlu0 %2382
      %v2384 = vadd.f32 %v2261, %v2263
      %2385 = vadd.xlane.f32.xlu0 %v2384
      %v2386 = vpop.xlane.xlu0 %2385
      %v2387 = vadd.f32 %v2265, %v2267
      %2388 = vadd.xlane.f32.xlu0 %v2387
      %v2389 = vpop.xlane.xlu0 %2388
      %v2390 = vadd.f32 %v2269, %v2271
      %2391 = vadd.xlane.f32.xlu0 %v2390
      %v2392 = vpop.xlane.xlu0 %2391
      %v2393 = vadd.f32 %v2273, %v2275
      %2394 = vadd.xlane.f32.xlu0 %v2393
      %v2395 = vpop.xlane.xlu0 %2394
      %v2396 = vadd.f32 %v2277, %v2279
      %2397 = vadd.xlane.f32.xlu0 %v2396
      %v2398 = vpop.xlane.xlu0 %2397
      %v2399 = vadd.f32 %v2281, %v2283
      %2400 = vadd.xlane.f32.xlu0 %v2399
      %v2401 = vpop.xlane.xlu0 %2400
      %v2402 = vadd.f32 %v2285, %v2287
      %2403 = vadd.xlane.f32.xlu0 %v2402
      %v2404 = vpop.xlane.xlu0 %2403
      %v2405 = vadd.f32 %v2289, %v2291
      %2406 = vadd.xlane.f32.xlu0 %v2405
      %v2407 = vpop.xlane.xlu0 %2406
      %v2408 = vadd.f32 %v2293, %v2295
      %2409 = vadd.xlane.f32.xlu0 %v2408
      %v2410 = vpop.xlane.xlu0 %2409
      %v2411 = vadd.f32 %v2297, %v2299
      %2412 = vadd.xlane.f32.xlu0 %v2411
      %v2413 = vpop.xlane.xlu0 %2412
      %v2414 = vadd.f32 %v2301, %v2303
      %2415 = vadd.xlane.f32.xlu0 %v2414
      %v2416 = vpop.xlane.xlu0 %2415
      %v2417 = vadd.f32 %v2305, %v2307
      %2418 = vadd.xlane.f32.xlu0 %v2417
      %v2419 = vpop.xlane.xlu0 %2418
      %v2420 = vadd.f32 %v2309, %v2311
      %2421 = vadd.xlane.f32.xlu0 %v2420
      %v2422 = vpop.xlane.xlu0 %2421
      %v2423 = vadd.f32 %v2313, %v2315
      %2424 = vadd.xlane.f32.xlu0 %v2423
      %v2425 = vpop.xlane.xlu0 %2424
      %v2426 = vadd.f32 %v2317, %v2319
      %2427 = vadd.xlane.f32.xlu0 %v2426
      %v2428 = vpop.xlane.xlu0 %2427
      %v2429 = vadd.f32 %v2321, %v2323
      %2430 = vadd.xlane.f32.xlu0 %v2429
      %v2431 = vpop.xlane.xlu0 %2430
      %v2432 = vadd.f32 %v2325, %v2327
      %2433 = vadd.xlane.f32.xlu0 %v2432
      %v2434 = vpop.xlane.xlu0 %2433
      %v2435 = vadd.f32 %v2329, %v2331
      %2436 = vadd.xlane.f32.xlu0 %v2435
      %v2437 = vpop.xlane.xlu0 %2436
      %v2438 = vadd.f32 %v2333, %v2335
      %2439 = vadd.xlane.f32.xlu0 %v2438
      %v2440 = vpop.xlane.xlu0 %2439
      %v2441 = vadd.f32 %v2337, %v2339
      %2442 = vadd.xlane.f32.xlu0 %v2441
      %v2443 = vpop.xlane.xlu0 %2442
      %v2444 = vadd.f32 %v2341, %v2343
      %2445 = vadd.xlane.f32.xlu0 %v2444
      %v2446 = vpop.xlane.xlu0 %2445
      %v2447 = vadd.f32 %v2345, %v2347
      %2448 = vadd.xlane.f32.xlu0 %v2447
      %v2449 = vpop.xlane.xlu0 %2448
      %v2450 = vadd.f32 %v2349, %v2351
      %2451 = vadd.xlane.f32.xlu0 %v2450
      %v2452 = vpop.xlane.xlu0 %2451
      %v2453 = vadd.f32 %v2353, %v2355
      %2454 = vadd.xlane.f32.xlu0 %v2453
      %v2455 = vpop.xlane.xlu0 %2454
      %v2456 = vadd.f32 %v2357, %v2359
      %2457 = vadd.xlane.f32.xlu0 %v2456
      %v2458 = vpop.xlane.xlu0 %2457
      %v2459 = vadd.f32 %v2361, %v2363
      %2460 = vadd.xlane.f32.xlu0 %v2459
      %v2461 = vpop.xlane.xlu0 %2460
      %v2462 = vadd.f32 %v2365, %v2367
      %2463 = vadd.xlane.f32.xlu0 %v2462
      %v2464 = vpop.xlane.xlu0 %2463
      %v2465 = vadd.f32 %v2369, %v2371
      %2466 = vadd.xlane.f32.xlu0 %v2465
      %v2467 = vpop.xlane.xlu0 %2466
      %v2468 = vrcp.pop %v2374
      %v2469 = vrcp.pop %v2377
      %v2470 = vrcp.pop %v2380
      %v2471 = vrcp.pop %v2383
      %v2472 = vrcp.pop %v2386
      %v2473 = vrcp.pop %v2389
      %v2474 = vrcp.pop %v2392
      %v2475 = vrcp.pop %v2395
      %v2476 = vrcp.pop %v2398
      %v2477 = vrcp.pop %v2401
      %v2478 = vrcp.pop %v2404
      %v2479 = vrcp.pop %v2407
      %v2480 = vrcp.pop %v2410
      %v2481 = vrcp.pop %v2413
      %v2482 = vrcp.pop %v2416
      %v2483 = vrcp.pop %v2419
      %v2484 = vrcp.pop %v2422
      %v2485 = vrcp.pop %v2425
      %v2486 = vrcp.pop %v2428
      %v2487 = vrcp.pop %v2431
      %v2488 = vrcp.pop %v2434
      %v2489 = vrcp.pop %v2437
      %v2490 = vrcp.pop %v2440
      %v2491 = vrcp.pop %v2443
      %v2492 = vrcp.pop %v2446
      %v2493 = vrcp.pop %v2449
      %v2494 = vrcp.pop %v2452
      %v2495 = vrcp.pop %v2455
      %v2496 = vrcp.pop %v2458
      %v2497 = vrcp.pop %v2461
      %v2498 = vrcp.pop %v2464
      %v2499 = vrcp.pop %v2467
      %v2500 = vmul.f32 %v2245, %v2468
      %v2501 = vmul.f32 %v2247, %v2468
      %v2502 = vmul.f32 %v2249, %v2469
      %v2503 = vmul.f32 %v2251, %v2469
      %v2504 = vmul.f32 %v2253, %v2470
      %v2505 = vmul.f32 %v2255, %v2470
      %v2506 = vmul.f32 %v2257, %v2471
      %v2507 = vmul.f32 %v2259, %v2471
      %v2508 = vmul.f32 %v2261, %v2472
      %v2509 = vmul.f32 %v2263, %v2472
      %v2510 = vmul.f32 %v2265, %v2473
      %v2511 = vmul.f32 %v2267, %v2473
      %v2512 = vmul.f32 %v2269, %v2474
      %v2513 = vmul.f32 %v2271, %v2474
      %v2514 = vmul.f32 %v2273, %v2475
      %v2515 = vmul.f32 %v2275, %v2475
      %v2516 = vmul.f32 %v2277, %v2476
      %v2517 = vmul.f32 %v2279, %v2476
      %v2518 = vmul.f32 %v2281, %v2477
      %v2519 = vmul.f32 %v2283, %v2477
      %v2520 = vmul.f32 %v2285, %v2478
      %v2521 = vmul.f32 %v2287, %v2478
      %v2522 = vmul.f32 %v2289, %v2479
      %v2523 = vmul.f32 %v2291, %v2479
      %v2524 = vmul.f32 %v2293, %v2480
      %v2525 = vmul.f32 %v2295, %v2480
      %v2526 = vmul.f32 %v2297, %v2481
      %v2527 = vmul.f32 %v2299, %v2481
      %v2528 = vmul.f32 %v2301, %v2482
      %v2529 = vmul.f32 %v2303, %v2482
      %v2530 = vmul.f32 %v2305, %v2483
      %v2531 = vmul.f32 %v2307, %v2483
      %v2532 = vmul.f32 %v2309, %v2484
      %v2533 = vmul.f32 %v2311, %v2484
      %v2534 = vmul.f32 %v2313, %v2485
      %v2535 = vmul.f32 %v2315, %v2485
      %v2536 = vmul.f32 %v2317, %v2486
      %v2537 = vmul.f32 %v2319, %v2486
      %v2538 = vmul.f32 %v2321, %v2487
      %v2539 = vmul.f32 %v2323, %v2487
      %v2540 = vmul.f32 %v2325, %v2488
      %v2541 = vmul.f32 %v2327, %v2488
      %v2542 = vmul.f32 %v2329, %v2489
      %v2543 = vmul.f32 %v2331, %v2489
      %v2544 = vmul.f32 %v2333, %v2490
      %v2545 = vmul.f32 %v2335, %v2490
      %v2546 = vmul.f32 %v2337, %v2491
      %v2547 = vmul.f32 %v2339, %v2491
      %v2548 = vmul.f32 %v2341, %v2492
      %v2549 = vmul.f32 %v2343, %v2492
      %v2550 = vmul.f32 %v2345, %v2493
      %v2551 = vmul.f32 %v2347, %v2493
      %v2552 = vmul.f32 %v2349, %v2494
      %v2553 = vmul.f32 %v2351, %v2494
      %v2554 = vmul.f32 %v2353, %v2495
      %v2555 = vmul.f32 %v2355, %v2495
      %v2556 = vmul.f32 %v2357, %v2496
      %v2557 = vmul.f32 %v2359, %v2496
      %v2558 = vmul.f32 %v2361, %v2497
      %v2559 = vmul.f32 %v2363, %v2497
      %v2560 = vmul.f32 %v2365, %v2498
      %v2561 = vmul.f32 %v2367, %v2498
      %v2562 = vmul.f32 %v2369, %v2499
      %v2563 = vmul.f32 %v2371, %v2499
      %v2564 = vadd.f32 %v2500, %v2502
      %v2565 = vadd.f32 %v2564, %v2504
      %v2566 = vadd.f32 %v2565, %v2506
      %v2567 = vadd.f32 %v2566, %v2508
      %v2568 = vadd.f32 %v2567, %v2510
      %v2569 = vadd.f32 %v2568, %v2512
      %v2570 = vadd.f32 %v2569, %v2514
      %v2571 = vadd.f32 %v2570, %v2516
      %v2572 = vadd.f32 %v2571, %v2518
      %v2573 = vadd.f32 %v2572, %v2520
      %v2574 = vadd.f32 %v2573, %v2522
      %v2575 = vadd.f32 %v2574, %v2524
      %v2576 = vadd.f32 %v2575, %v2526
      %v2577 = vadd.f32 %v2576, %v2528
      %v2578 = vadd.f32 %v2577, %v2530
      %v2579 = vadd.f32 %v2578, %v2532
      %v2580 = vadd.f32 %v2579, %v2534
      %v2581 = vadd.f32 %v2580, %v2536
      %v2582 = vadd.f32 %v2581, %v2538
      %v2583 = vadd.f32 %v2582, %v2540
      %v2584 = vadd.f32 %v2583, %v2542
      %v2585 = vadd.f32 %v2584, %v2544
      %v2586 = vadd.f32 %v2585, %v2546
      %v2587 = vadd.f32 %v2586, %v2548
      %v2588 = vadd.f32 %v2587, %v2550
      %v2589 = vadd.f32 %v2588, %v2552
      %v2590 = vadd.f32 %v2589, %v2554
      %v2591 = vadd.f32 %v2590, %v2556
      %v2592 = vadd.f32 %v2591, %v2558
      %v2593 = vadd.f32 %v2592, %v2560
      %v2594 = vadd.f32 %v2593, %v2562
      %v2595 = vrot.slane %v2594, 4
      %v2596 = vadd.f32 %v2594, %v2595
      %v2597 = vrot.slane %v2596, 2
      %v2598 = vadd.f32 %v2596, %v2597
      %v2599 = vrot.slane %v2598, 1
      %v2600 = vadd.f32 %v2598, %v2599
      %v2601 = vadd.f32 %v2501, %v2503
      %v2602 = vadd.f32 %v2601, %v2505
      %v2603 = vadd.f32 %v2602, %v2507
      %v2604 = vadd.f32 %v2603, %v2509
      %v2605 = vadd.f32 %v2604, %v2511
      %v2606 = vadd.f32 %v2605, %v2513
      %v2607 = vadd.f32 %v2606, %v2515
      %v2608 = vadd.f32 %v2607, %v2517
      %v2609 = vadd.f32 %v2608, %v2519
      %v2610 = vadd.f32 %v2609, %v2521
      %v2611 = vadd.f32 %v2610, %v2523
      %v2612 = vadd.f32 %v2611, %v2525
      %v2613 = vadd.f32 %v2612, %v2527
      %v2614 = vadd.f32 %v2613, %v2529
      %v2615 = vadd.f32 %v2614, %v2531
      %v2616 = vadd.f32 %v2615, %v2533
      %v2617 = vadd.f32 %v2616, %v2535
      %v2618 = vadd.f32 %v2617, %v2537
      %v2619 = vadd.f32 %v2618, %v2539
      %v2620 = vadd.f32 %v2619, %v2541
      %v2621 = vadd.f32 %v2620, %v2543
      %v2622 = vadd.f32 %v2621, %v2545
      %v2623 = vadd.f32 %v2622, %v2547
      %v2624 = vadd.f32 %v2623, %v2549
      %v2625 = vadd.f32 %v2624, %v2551
      %v2626 = vadd.f32 %v2625, %v2553
      %v2627 = vadd.f32 %v2626, %v2555
      %v2628 = vadd.f32 %v2627, %v2557
      %v2629 = vadd.f32 %v2628, %v2559
      %v2630 = vadd.f32 %v2629, %v2561
      %v2631 = vadd.f32 %v2630, %v2563
      %v2632 = vrot.slane %v2631, 4
      %v2633 = vadd.f32 %v2631, %v2632
      %v2634 = vrot.slane %v2633, 2
      %v2635 = vadd.f32 %v2633, %v2634
      %v2636 = vrot.slane %v2635, 1
      %v2637 = vadd.f32 %v2635, %v2636
      %v2638 = vmax.f32 %v2600, 1e-12
      %v2639 = vmax.f32 %v2637, 1e-12
      %v2640 = vrcp.pop %v2638
      %v2641 = vrcp.pop %v2639
      %v2642 = vmul.f32 %v2500, %v2640
      %v2643 = vmul.f32 %v2501, %v2641
      %v2644 = vmul.f32 %v2502, %v2640
      %v2645 = vmul.f32 %v2503, %v2641
      %v2646 = vmul.f32 %v2504, %v2640
      %v2647 = vmul.f32 %v2505, %v2641
      %v2648 = vmul.f32 %v2506, %v2640
      %v2649 = vmul.f32 %v2507, %v2641
      %v2650 = vmul.f32 %v2508, %v2640
      %v2651 = vmul.f32 %v2509, %v2641
      %v2652 = vmul.f32 %v2510, %v2640
      %v2653 = vmul.f32 %v2511, %v2641
      %v2654 = vmul.f32 %v2512, %v2640
      %v2655 = vmul.f32 %v2513, %v2641
      %v2656 = vmul.f32 %v2514, %v2640
      %v2657 = vmul.f32 %v2515, %v2641
      %v2658 = vmul.f32 %v2516, %v2640
      %v2659 = vmul.f32 %v2517, %v2641
      %v2660 = vmul.f32 %v2518, %v2640
      %v2661 = vmul.f32 %v2519, %v2641
      %v2662 = vmul.f32 %v2520, %v2640
      %v2663 = vmul.f32 %v2521, %v2641
      %v2664 = vmul.f32 %v2522, %v2640
      %v2665 = vmul.f32 %v2523, %v2641
      %v2666 = vmul.f32 %v2524, %v2640
      %v2667 = vmul.f32 %v2525, %v2641
      %v2668 = vmul.f32 %v2526, %v2640
      %v2669 = vmul.f32 %v2527, %v2641
      %v2670 = vmul.f32 %v2528, %v2640
      %v2671 = vmul.f32 %v2529, %v2641
      %v2672 = vmul.f32 %v2530, %v2640
      %v2673 = vmul.f32 %v2531, %v2641
      %v2674 = vmul.f32 %v2532, %v2640
      %v2675 = vmul.f32 %v2533, %v2641
      %v2676 = vmul.f32 %v2534, %v2640
      %v2677 = vmul.f32 %v2535, %v2641
      %v2678 = vmul.f32 %v2536, %v2640
      %v2679 = vmul.f32 %v2537, %v2641
      %v2680 = vmul.f32 %v2538, %v2640
      %v2681 = vmul.f32 %v2539, %v2641
      %v2682 = vmul.f32 %v2540, %v2640
      %v2683 = vmul.f32 %v2541, %v2641
      %v2684 = vmul.f32 %v2542, %v2640
      %v2685 = vmul.f32 %v2543, %v2641
      %v2686 = vmul.f32 %v2544, %v2640
      %v2687 = vmul.f32 %v2545, %v2641
      %v2688 = vmul.f32 %v2546, %v2640
      %v2689 = vmul.f32 %v2547, %v2641
      %v2690 = vmul.f32 %v2548, %v2640
      %v2691 = vmul.f32 %v2549, %v2641
      %v2692 = vmul.f32 %v2550, %v2640
      %v2693 = vmul.f32 %v2551, %v2641
      %v2694 = vmul.f32 %v2552, %v2640
      %v2695 = vmul.f32 %v2553, %v2641
      %v2696 = vmul.f32 %v2554, %v2640
      %v2697 = vmul.f32 %v2555, %v2641
      %v2698 = vmul.f32 %v2556, %v2640
      %v2699 = vmul.f32 %v2557, %v2641
      %v2700 = vmul.f32 %v2558, %v2640
      %v2701 = vmul.f32 %v2559, %v2641
      %v2702 = vmul.f32 %v2560, %v2640
      %v2703 = vmul.f32 %v2561, %v2641
      %v2704 = vmul.f32 %v2562, %v2640
      %v2705 = vmul.f32 %v2563, %v2641
      %2707 = vset.pattern.permute.xlu0 0
      %2708 = vperm.xlu0 %2707, %v385
      %v2709 = vpop.permute.xlu0 %2708
      %v2712 = vsel %vm456, %v384, 0
      %2714 = vmatprep.subr.mxu0 0.0
      %2715 = vmatpush1.msra.mxu0 0.0
      %2716 = vmatprep.subr.mxu0 0.0
      %2717 = vmatpush1.msra.mxu0 0.0
      %2718 = vmatprep.subr.mxu0 0.0
      %2719 = vmatpush1.msra.mxu0 0.0
      %2720 = vmatprep.subr.mxu0 0.0
      %2721 = vmatpush1.msra.mxu0 0.0
      %2722 = vmatprep.subr.mxu0 0.0
      %2723 = vmatpush1.msra.mxu0 0.0
      %2724 = vmatprep.subr.mxu0 0.0
      %2725 = vmatpush1.msra.mxu0 0.0
      %2726 = vmatprep.subr.mxu0 0.0
      %2727 = vmatpush1.msra.mxu0 0.0
      %2728 = vmatprep.subr.mxu0 0.0
      %2729 = vmatpush1.msra.mxu0 0.0
      %2730 = vmatprep.subr.mxu0 0.0
      %2731 = vmatpush1.msra.mxu0 0.0
      %2732 = vmatprep.subr.mxu0 0.0
      %2733 = vmatpush1.msra.mxu0 0.0
      %2734 = vmatprep.subr.mxu0 0.0
      %2735 = vmatpush1.msra.mxu0 0.0
      %2736 = vmatprep.subr.mxu0 0.0
      %2737 = vmatpush1.msra.mxu0 0.0
      %2738 = vmatprep.subr.mxu0 0.0
      %2739 = vmatpush1.msra.mxu0 0.0
      %2740 = vmatprep.subr.mxu0 0.0
      %2741 = vmatpush1.msra.mxu0 0.0
      %2742 = vmatprep.subr.mxu0 0.0
      %2743 = vmatpush1.msra.mxu0 0.0
      %2744 = vmatprep.subr.mxu0 %v1666
      %2745 = vmatpush1.msra.mxu0 %v1665
      %2746 = vmatprep.subr.mxu0 0.0
      %2747 = vmatpush2.msra.mxu0 0.0
      %2748 = vmatprep.subr.mxu0 0.0
      %2749 = vmatpush2.msra.mxu0 0.0
      %2750 = vmatprep.subr.mxu0 0.0
      %2751 = vmatpush2.msra.mxu0 0.0
      %2752 = vmatprep.subr.mxu0 0.0
      %2753 = vmatpush2.msra.mxu0 0.0
      %2754 = vmatprep.subr.mxu0 0.0
      %2755 = vmatpush2.msra.mxu0 0.0
      %2756 = vmatprep.subr.mxu0 0.0
      %2757 = vmatpush2.msra.mxu0 0.0
      %2758 = vmatprep.subr.mxu0 0.0
      %2759 = vmatpush2.msra.mxu0 0.0
      %2760 = vmatprep.subr.mxu0 0.0
      %2761 = vmatpush2.msra.mxu0 0.0
      %2762 = vmatprep.subr.mxu0 0.0
      %2763 = vmatpush2.msra.mxu0 0.0
      %2764 = vmatprep.subr.mxu0 0.0
      %2765 = vmatpush2.msra.mxu0 0.0
      %2766 = vmatprep.subr.mxu0 0.0
      %2767 = vmatpush2.msra.mxu0 0.0
      %2768 = vmatprep.subr.mxu0 0.0
      %2769 = vmatpush2.msra.mxu0 0.0
      %2770 = vmatprep.subr.mxu0 0.0
      %2771 = vmatpush2.msra.mxu0 0.0
      %2772 = vmatprep.subr.mxu0 0.0
      %2773 = vmatpush2.msra.mxu0 0.0
      %2774 = vmatprep.subr.mxu0 0.0
      %2775 = vmatpush2.msra.mxu0 0.0
      %2776 = vmatprep.subr.mxu0 0.0
      %2777 = vmatpush2.msra.mxu0 0.0
      %2778 = vmatprep.mubr.f32.mxu0 0.0
      %2779 = vmatmul.mubr.f32.gmra.mxu0 %v2712
      %v2780 = vpop.f32.mrf.mxu0
      %v2781 = vadd.f32 %v2709, %v2780
      %v2782 = vpop.f32.mrf.mxu0
      %v2783 = vadd.f32 %v2709, %v2782
      %2784 = vdwg.mxu0
      %v2785 = vmax.f32 %v2781, 0.0
      %v2786 = vmax.f32 %v2783, 0.0
      %2788 = vset.pattern.permute.xlu0 0
      %2789 = vperm.xlu0 %2788, %v387
      %v2790 = vpop.permute.xlu0 %2789
      %v2793 = vsel %vm456, %v386, 0
      %2795 = vmatprep.subr.mxu0 0.0
      %2796 = vmatpush1.msra.mxu0 0.0
      %2797 = vmatprep.subr.mxu0 0.0
      %2798 = vmatpush1.msra.mxu0 0.0
      %2799 = vmatprep.subr.mxu0 0.0
      %2800 = vmatpush1.msra.mxu0 0.0
      %2801 = vmatprep.subr.mxu0 0.0
      %2802 = vmatpush1.msra.mxu0 0.0
      %2803 = vmatprep.subr.mxu0 0.0
      %2804 = vmatpush1.msra.mxu0 0.0
      %2805 = vmatprep.subr.mxu0 0.0
      %2806 = vmatpush1.msra.mxu0 0.0
      %2807 = vmatprep.subr.mxu0 0.0
      %2808 = vmatpush1.msra.mxu0 0.0
      %2809 = vmatprep.subr.mxu0 0.0
      %2810 = vmatpush1.msra.mxu0 0.0
      %2811 = vmatprep.subr.mxu0 0.0
      %2812 = vmatpush1.msra.mxu0 0.0
      %2813 = vmatprep.subr.mxu0 0.0
      %2814 = vmatpush1.msra.mxu0 0.0
      %2815 = vmatprep.subr.mxu0 0.0
      %2816 = vmatpush1.msra.mxu0 0.0
      %2817 = vmatprep.subr.mxu0 0.0
      %2818 = vmatpush1.msra.mxu0 0.0
      %2819 = vmatprep.subr.mxu0 0.0
      %2820 = vmatpush1.msra.mxu0 0.0
      %2821 = vmatprep.subr.mxu0 0.0
      %2822 = vmatpush1.msra.mxu0 0.0
      %2823 = vmatprep.subr.mxu0 0.0
      %2824 = vmatpush1.msra.mxu0 0.0
      %2825 = vmatprep.subr.mxu0 %v1666
      %2826 = vmatpush1.msra.mxu0 %v1665
      %2827 = vmatprep.subr.mxu0 0.0
      %2828 = vmatpush2.msra.mxu0 0.0
      %2829 = vmatprep.subr.mxu0 0.0
      %2830 = vmatpush2.msra.mxu0 0.0
      %2831 = vmatprep.subr.mxu0 0.0
      %2832 = vmatpush2.msra.mxu0 0.0
      %2833 = vmatprep.subr.mxu0 0.0
      %2834 = vmatpush2.msra.mxu0 0.0
      %2835 = vmatprep.subr.mxu0 0.0
      %2836 = vmatpush2.msra.mxu0 0.0
      %2837 = vmatprep.subr.mxu0 0.0
      %2838 = vmatpush2.msra.mxu0 0.0
      %2839 = vmatprep.subr.mxu0 0.0
      %2840 = vmatpush2.msra.mxu0 0.0
      %2841 = vmatprep.subr.mxu0 0.0
      %2842 = vmatpush2.msra.mxu0 0.0
      %2843 = vmatprep.subr.mxu0 0.0
      %2844 = vmatpush2.msra.mxu0 0.0
      %2845 = vmatprep.subr.mxu0 0.0
      %2846 = vmatpush2.msra.mxu0 0.0
      %2847 = vmatprep.subr.mxu0 0.0
      %2848 = vmatpush2.msra.mxu0 0.0
      %2849 = vmatprep.subr.mxu0 0.0
      %2850 = vmatpush2.msra.mxu0 0.0
      %2851 = vmatprep.subr.mxu0 0.0
      %2852 = vmatpush2.msra.mxu0 0.0
      %2853 = vmatprep.subr.mxu0 0.0
      %2854 = vmatpush2.msra.mxu0 0.0
      %2855 = vmatprep.subr.mxu0 0.0
      %2856 = vmatpush2.msra.mxu0 0.0
      %2857 = vmatprep.subr.mxu0 0.0
      %2858 = vmatpush2.msra.mxu0 0.0
      %2859 = vmatprep.mubr.f32.mxu0 0.0
      %2860 = vmatmul.mubr.f32.gmra.mxu0 %v2793
      %v2861 = vpop.f32.mrf.mxu0
      %v2862 = vadd.f32 %v2790, %v2861
      %v2863 = vpop.f32.mrf.mxu0
      %v2864 = vadd.f32 %v2790, %v2863
      %2865 = vdwg.mxu0
      %v2866 = vmax.f32 %v2862, 0.0
      %v2867 = vmax.f32 %v2864, 0.0
      %2868 = vmatprep.subr.mxu0 %v2673
      %2869 = vmatpush1.xpose.msra.mxu0 %v2672
      %2870 = vmatprep.subr.mxu0 %v2671
      %2871 = vmatpush1.xpose.msra.mxu0 %v2670
      %2872 = vmatprep.subr.mxu0 %v2669
      %2873 = vmatpush1.xpose.msra.mxu0 %v2668
      %2874 = vmatprep.subr.mxu0 %v2667
      %2875 = vmatpush1.xpose.msra.mxu0 %v2666
      %2876 = vmatprep.subr.mxu0 %v2665
      %2877 = vmatpush1.xpose.msra.mxu0 %v2664
      %2878 = vmatprep.subr.mxu0 %v2663
      %2879 = vmatpush1.xpose.msra.mxu0 %v2662
      %2880 = vmatprep.subr.mxu0 %v2661
      %2881 = vmatpush1.xpose.msra.mxu0 %v2660
      %2882 = vmatprep.subr.mxu0 %v2659
      %2883 = vmatpush1.xpose.msra.mxu0 %v2658
      %2884 = vmatprep.subr.mxu0 %v2657
      %2885 = vmatpush1.xpose.msra.mxu0 %v2656
      %2886 = vmatprep.subr.mxu0 %v2655
      %2887 = vmatpush1.xpose.msra.mxu0 %v2654
      %2888 = vmatprep.subr.mxu0 %v2653
      %2889 = vmatpush1.xpose.msra.mxu0 %v2652
      %2890 = vmatprep.subr.mxu0 %v2651
      %2891 = vmatpush1.xpose.msra.mxu0 %v2650
      %2892 = vmatprep.subr.mxu0 %v2649
      %2893 = vmatpush1.xpose.msra.mxu0 %v2648
      %2894 = vmatprep.subr.mxu0 %v2647
      %2895 = vmatpush1.xpose.msra.mxu0 %v2646
      %2896 = vmatprep.subr.mxu0 %v2645
      %2897 = vmatpush1.xpose.msra.mxu0 %v2644
      %2898 = vmatprep.subr.mxu0 %v2643
      %2899 = vmatpush1.xpose.msra.mxu0 %v2642
      %2900 = vmatprep.subr.mxu0 %v2705
      %2901 = vmatpush2.xpose.msra.mxu0 %v2704
      %2902 = vmatprep.subr.mxu0 %v2703
      %2903 = vmatpush2.xpose.msra.mxu0 %v2702
      %2904 = vmatprep.subr.mxu0 %v2701
      %2905 = vmatpush2.xpose.msra.mxu0 %v2700
      %2906 = vmatprep.subr.mxu0 %v2699
      %2907 = vmatpush2.xpose.msra.mxu0 %v2698
      %2908 = vmatprep.subr.mxu0 %v2697
      %2909 = vmatpush2.xpose.msra.mxu0 %v2696
      %2910 = vmatprep.subr.mxu0 %v2695
      %2911 = vmatpush2.xpose.msra.mxu0 %v2694
      %2912 = vmatprep.subr.mxu0 %v2693
      %2913 = vmatpush2.xpose.msra.mxu0 %v2692
      %2914 = vmatprep.subr.mxu0 %v2691
      %2915 = vmatpush2.xpose.msra.mxu0 %v2690
      %2916 = vmatprep.subr.mxu0 %v2689
      %2917 = vmatpush2.xpose.msra.mxu0 %v2688
      %2918 = vmatprep.subr.mxu0 %v2687
      %2919 = vmatpush2.xpose.msra.mxu0 %v2686
      %2920 = vmatprep.subr.mxu0 %v2685
      %2921 = vmatpush2.xpose.msra.mxu0 %v2684
      %2922 = vmatprep.subr.mxu0 %v2683
      %2923 = vmatpush2.xpose.msra.mxu0 %v2682
      %2924 = vmatprep.subr.mxu0 %v2681
      %2925 = vmatpush2.xpose.msra.mxu0 %v2680
      %2926 = vmatprep.subr.mxu0 %v2679
      %2927 = vmatpush2.xpose.msra.mxu0 %v2678
      %2928 = vmatprep.subr.mxu0 %v2677
      %2929 = vmatpush2.xpose.msra.mxu0 %v2676
      %2930 = vmatprep.subr.mxu0 %v2675
      %2931 = vmatpush2.xpose.msra.mxu0 %v2674
      %2932 = vmatprep.mubr.f32.mxu0 %v2867
      %2933 = vmatmul.mubr.f32.gmra.mxu0 %v2866
      %v2934 = vpop.f32.mrf.mxu0
      %v2935 = vadd.f32 %v2785, %v2934
      %v2936 = vpop.f32.mrf.mxu0
      %v2937 = vadd.f32 %v2786, %v2936
      %2938 = vdwg.mxu0
      %v2939 = vadd.f32 %v2935, %v1665
      %v2940 = vadd.f32 %v2937, %v1666
      %2941 = vst [vmem:[%s379] sm:$0xff] %v2939
      %2942 = vst [vmem:[%s379 + $0x8] sm:$0xff] %v2940
      %p2943 = scmp.lt.s32.totalorder %s21, 1
      %s2944 = scalar_select %p2943, %s21, 1
      %s2945 = smul.addr %s2944, 2
      %s2946 = smul.addr %s2945, 8
      %s2947 = scalar_lea.vmem %s10, %s2946
      // Predicated region
      $region61: #{gnn_forward.1} parent=59 // pred_check
        %p2948 = pneg %p259
      $region62: #{gnn_forward.1} parent=59 // pred_check_branch
        %2950 = sbr.rel (%p2948) target = $region64
      $region63: #{gnn_forward.1} parent=59 // pred_region
        _
      $region64: #{gnn_forward.1} parent=59 // pred_fallthru
        _
    $region60: #{gnn_forward.1} parent=5 // pred_fallthru
      _
    %p2951 = scmp.le.s32.totalorder 2, %s16
    // Predicated region
    $region65: #{gnn_forward.1} parent=5 // pred_check
      %p2952 = pneg %p2951
    $region66: #{gnn_forward.1} parent=5 // pred_check_branch
      %2954 = sbr.rel (%p2952) target = $region68
    $region67: #{gnn_forward.1} parent=5 // pred_region
      %s2955 = ssub.s32 %s16, 2
      // Predicated region
      $region69: #{gnn_forward.1} parent=67 // pred_check
        %p2956 = pneg %p265
      $region70: #{gnn_forward.1} parent=67 // pred_check_branch
        %2958 = sbr.rel (%p2956) target = $region72
      $region71: #{gnn_forward.1} parent=67 // pred_region
        %p2959 = scmp.lt.s32.totalorder %s22, 1
        %s2960 = scalar_select %p2959, %s22, 1
        %s2961 = smul.addr %s2960, 2
        %s2962 = smul.addr %s2961, 8
        %s2963 = scalar_lea.vmem %s10, %s2962
      $region72: #{gnn_forward.1} parent=67 // pred_fallthru
        _
    $region68: #{gnn_forward.1} parent=5 // pred_fallthru
      _
  $region6: #{gnn_forward.1} parent=0 // loop_footer
    %s20 = sadd.s32 1, %s16
  $region7: #{gnn_forward.1} parent=0 // loop_footer_branch
    %15 = sbr.rel target = $region3
  $region8: #{gnn_forward.1} parent=0 // loop_exit
    _

</llo_original>
